<compile_context>
chip_gen: v7x
topology: tpu7x:2x2x1
jax: 0.10.0
libtpu: 0.0.40
codegen_flags: <defaults>
</compile_context>

<pallas_src>
import functools

import jax
import jax.numpy as jnp
from jax import lax
from jax.experimental import pallas as pl
from jax.experimental.pallas import tpu as pltpu


# ----------------------------------------------------------------------------
# Fused Pallas kernel: all bottleneck reps for a batch tile of `bt` images
# ----------------------------------------------------------------------------
def _bottleneck_kernel(*refs, num_reps, bt, H, W, C1, C3):
    x_ref = refs[0]                        # (bt, H, W*Cin0p)    bf16
    o_ref = refs[1 + 6 * num_reps]         # (bt, H, W*C3)       f32
    ypad_ref = refs[2 + 6 * num_reps]      # (bt*(H+4), W*C1)    bf16 scratch

    HP = H + 4                             # per-image rows in the padded scratch
    WC3 = W * C3

    # Zero ONLY the halo rows of each per-image slab; the interior is fully
    # overwritten every rep.  Halo writes start at even row offsets and span
    # 2 rows -> aligned w.r.t. bf16 2-row sublane packing.
    zrow2 = jnp.zeros((2, W * C1), jnp.bfloat16)
    for b in range(bt):
        ypad_ref[b * HP:b * HP + 2, :] = zrow2
        ypad_ref[b * HP + H + 2:b * HP + H + 4, :] = zrow2

    # Fold the batch tile into the matmul M dimension.
    x = x_ref[...].reshape(bt * H, -1)     # bf16, (bt*H, W*Cin)
    xf = None                              # f32 carrier for the residual path
    for r in range(num_reps):
        w1_ref, s1_ref, t1_ref, w3_ref, s3_ref, t3_ref = refs[1 + 6 * r:7 + 6 * r]

        # ---- 1x1 conv: one block-diagonal bf16 MXU matmul, f32 accumulate ----
        y = jnp.dot(x, w1_ref[...], preferred_element_type=jnp.float32)  # (bt*H, W*C1)
        y = y * s1_ref[...] + t1_ref[...]                 # BN (conv bias folded)
        y = y * jax.nn.sigmoid(y)                         # SiLU (f32 VPU/EUP)

        # ---- 3x3 conv (stride 1, pad 1): single fused matmul over all three
        #      dy taps.  Interior store starts at even row offset (aligned). ---
        yb = y.astype(jnp.bfloat16)
        for b in range(bt):
            ypad_ref[b * HP + 2:b * HP + 2 + H, :] = yb[b * H:(b + 1) * H, :]

        r3 = jnp.dot(ypad_ref[...], w3_ref[...],
                     preferred_element_type=jnp.float32)  # (bt*HP, 3*W*C3)

        # Sum the three sublane-shifted f32 result slices per image (cheap VPU
        # adds; replaces the 3 misaligned bf16 matmul reads of the old kernel).
        zs = []
        for b in range(bt):
            o = b * HP
            zb = (r3[o + 1:o + 1 + H, 0:WC3]
                  + r3[o + 2:o + 2 + H, WC3:2 * WC3]
                  + r3[o + 3:o + 3 + H, 2 * WC3:3 * WC3])
            zs.append(zb)
        z = zs[0] if bt == 1 else jnp.concatenate(zs, axis=0)   # (bt*H, W*C3)

        z = z * s3_ref[...] + t3_ref[...]                 # BN (conv bias folded)
        z = z * jax.nn.sigmoid(z)                         # SiLU
        if r > 0:                                         # x = layer(x) + x
            z = z + xf
        xf = z                                            # f32 residual carrier
        x = z.astype(jnp.bfloat16)                        # bf16 MXU operand, next rep

    o_ref[...] = xf.reshape(bt, H, WC3).astype(o_ref.dtype)


# ----------------------------------------------------------------------------
# Wrapper: NCHW in / NCHW out, batch-tile grid, lane-dense (N, H, W*C) blocks
# ----------------------------------------------------------------------------
def _cores_per_chip():
    # v7x has 2 TensorCores per chip; v5e/v6e have 1.  Heuristic on device_kind.
    try:
        kind = jax.devices()[0].device_kind.lower()
    except Exception:
        return 1
    return 2 if "v7" in kind else 1


def _choose_grid(N, H):
    bt_fill = max(1, 128 // max(H, 1))       # batch rows that fill an MXU M tile
    steps = max(1, pl.cdiv(N, bt_fill))      # one big step on 1-TC chips if possible
    cores = _cores_per_chip()
    if cores > 1:
        steps = max(steps, min(N, cores))    # keep every TensorCore busy (v7x)
    bt = pl.cdiv(N, steps)
    return steps, bt


def _const_spec(arr):
    zeros = (0,) * arr.ndim
    return pl.BlockSpec(arr.shape, lambda n, _z=zeros: _z)


def bottleneck_forward(x_nchw, packed_params):
    N, Cin, H, W = x_nchw.shape
    R = len(packed_params)
    Cinp = packed_params[0]["w1bd"].shape[0] // W        # (maybe padded) rep-0 Cin
    C1 = packed_params[0]["w1bd"].shape[1] // W
    C3 = packed_params[0]["w3cat"].shape[1] // (3 * W)
    assert Cinp >= Cin
    for r, p in enumerate(packed_params):
        assert p["w3cat"].shape[0] == W * C1
        if r > 0:
            assert p["w1bd"].shape[0] == W * C3, (
                "residual path requires in_channels == num_3x3_filters for reps > 0")

    steps, bt = _choose_grid(N, H)
    Npad = steps * bt

    # NCHW -> NHWC, pad rep-0 channels for a >=128 lane dim, pad batch to the
    # grid, lane-dense (Npad, H, W*Cinp) view, pre-cast to bf16 (halves input
    # DMA and removes the in-kernel cast; the MXU operand is bf16 either way).
    x = jnp.transpose(x_nchw, (0, 2, 3, 1))
    if Cinp > Cin:
        x = jnp.pad(x, ((0, 0), (0, 0), (0, 0), (0, Cinp - Cin)))
    if Npad > N:
        x = jnp.pad(x, ((0, Npad - N), (0, 0), (0, 0), (0, 0)))
    x = x.reshape(Npad, H, W * Cinp).astype(jnp.bfloat16)

    flat_inputs = [x]
    in_specs = [pl.BlockSpec((bt, H, W * Cinp), lambda n: (n, 0, 0))]
    for p in packed_params:
        for name in ("w1bd", "s1", "t1", "w3cat", "s3", "t3"):
            flat_inputs.append(p[name])
            in_specs.append(_const_spec(p[name]))

    kern = functools.partial(_bottleneck_kernel,
                             num_reps=R, bt=bt, H=H, W=W, C1=C1, C3=C3)
    out = pl.pallas_call(
        kern,
        out_shape=jax.ShapeDtypeStruct((Npad, H, W * C3), jnp.float32),
        grid=(steps,),
        in_specs=in_specs,
        out_specs=pl.BlockSpec((bt, H, W * C3), lambda n: (n, 0, 0)),
        scratch_shapes=[pltpu.VMEM((bt * (H + 4), W * C1), jnp.bfloat16)],
        compiler_params=pltpu.CompilerParams(
            dimension_semantics=("parallel",)),
    )(*flat_inputs)

    out = out.reshape(Npad, H, W, C3)[:N]
    return jnp.transpose(out, (0, 3, 1, 2))


# ----------------------------------------------------------------------------
# Parameter init (synthetic, deterministic) + packing glue
# ----------------------------------------------------------------------------
def init_rep_params(key, cin, c1, c3):
    ks = jax.random.split(key, 12)
    return {
        "w1": 0.2 * jax.random.normal(ks[0], (cin, c1), jnp.float32),       # 1x1, IO
        "b1": 0.1 * jax.random.normal(ks[1], (c1,), jnp.float32),
        "g1": 1.0 + 0.1 * jax.random.normal(ks[2], (c1,), jnp.float32),
        "be1": 0.1 * jax.random.normal(ks[3], (c1,), jnp.float32),
        "m1": 0.1 * jax.random.normal(ks[4], (c1,), jnp.float32),
        "v1": jnp.abs(1.0 + 0.1 * jax.random.normal(ks[5], (c1,), jnp.float32)),
        "w3": 0.1 * jax.random.normal(ks[6], (3, 3, c1, c3), jnp.float32),  # HWIO
        "b3": 0.1 * jax.random.normal(ks[7], (c3,), jnp.float32),
        "g3": 1.0 + 0.1 * jax.random.normal(ks[8], (c3,), jnp.float32),
        "be3": 0.1 * jax.random.normal(ks[9], (c3,), jnp.float32),
        "m3": 0.1 * jax.random.normal(ks[10], (c3,), jnp.float32),
        "v3": jnp.abs(1.0 + 0.1 * jax.random.normal(ks[11], (c3,), jnp.float32)),
    }


def _fold_bn(bias, gamma, beta, mean, var, eps=1e-5):
    scale = gamma / jnp.sqrt(var + eps)
    shift = beta + (bias - mean) * scale      # conv bias folded into BN shift
    return scale, shift


def _rep0_cin_pad(cin, W):
    # Pad rep-0 input channels so the lane dim W*cin is >= 128 (unmasked loads).
    return max(cin, -(-128 // W))


def pack_rep_params(p, W, cin_pad=None):
    cin, c1 = p["w1"].shape
    c3 = p["w3"].shape[3]
    s1, t1 = _fold_bn(p["b1"], p["g1"], p["be1"], p["m1"], p["v1"])
    s3, t3 = _fold_bn(p["b3"], p["g3"], p["be3"], p["m3"], p["v3"])

    w1 = p["w1"]
    if cin_pad is not None and cin_pad > cin:
        w1 = jnp.concatenate(
            [w1, jnp.zeros((cin_pad - cin, c1), w1.dtype)], axis=0)

    # 1x1 conv -> block-diagonal (W*cin, W*c1): a whole image row (or batch of
    # rows) becomes one lane-dense MXU matmul.
    w1bd = jnp.kron(jnp.eye(W, dtype=jnp.float32), w1)

    # 3x3 conv -> block-tridiagonal (W*c1, W*c3) per dy tap (dx taps and the
    # zero padding along W folded into the band), concatenated along the output
    # axis so all three dy taps run as ONE (W*c1, 3*W*c3) matmul.
    bands = [sum(jnp.kron(jnp.eye(W, k=1 - dx, dtype=jnp.float32), p["w3"][dy, dx])
                 for dx in range(3))
             for dy in range(3)]
    w3cat = jnp.concatenate(bands, axis=1)

    return {
        "w1bd": w1bd.astype(jnp.bfloat16),
        "s1": jnp.tile(s1, W).reshape(1, W * c1),
        "t1": jnp.tile(t1, W).reshape(1, W * c1),
        "w3cat": w3cat.astype(jnp.bfloat16),
        "s3": jnp.tile(s3, W).reshape(1, W * c3),
        "t3": jnp.tile(t3, W).reshape(1, W * c3),
    }


# ----------------------------------------------------------------------------
# Pure-JAX reference (f32, HIGHEST) for correctness check
# ----------------------------------------------------------------------------
def _ref_rep(x_nhwc, p, has_residual, eps=1e-5):
    cin, c1 = p["w1"].shape
    y = lax.conv_general_dilated(
        x_nhwc, p["w1"].reshape(1, 1, cin, c1), (1, 1), "VALID",
        dimension_numbers=("NHWC", "HWIO", "NHWC"),
        precision=lax.Precision.HIGHEST) + p["b1"]
    y = (y - p["m1"]) * (p["g1"] / jnp.sqrt(p["v1"] + eps)) + p["be1"]
    y = y * jax.nn.sigmoid(y)
    z = lax.conv_general_dilated(
        y, p["w3"], (1, 1), ((1, 1), (1, 1)),
        dimension_numbers=("NHWC", "HWIO", "NHWC"),
        precision=lax.Precision.HIGHEST) + p["b3"]
    z = (z - p["m3"]) * (p["g3"] / jnp.sqrt(p["v3"] + eps)) + p["be3"]
    z = z * jax.nn.sigmoid(z)
    return z + x_nhwc if has_residual else z


def bottleneck_reference(x_nchw, logical_params):
    x = jnp.transpose(x_nchw, (0, 2, 3, 1))
    for i, p in enumerate(logical_params):
        x = _ref_rep(x, p, has_residual=(i > 0))
    return jnp.transpose(x, (0, 3, 1, 2))


# ----------------------------------------------------------------------------
if __name__ == "__main__":
    # bottleneck(in_channels=4, num_1x1_filters_per_rep=8,
    #            num_3x3_filters_per_rep=16, num_reps=2, downsample=False)
    N, Cin, H, W = 2, 4, 16, 16
    C1, C3, num_reps = 8, 16, 2

    key = jax.random.PRNGKey(0)
    kx, kp = jax.random.split(key)
    x_nchw = jax.random.normal(kx, (N, Cin, H, W), jnp.float32)

    logical = []
    cin = Cin
    for _ in range(num_reps):
        kp, kr = jax.random.split(kp)
        logical.append(init_rep_params(kr, cin, C1, C3))
        cin = C3                                   # next rep's in_channels

    packed = []
    cin = Cin
    for i, p in enumerate(logical):
        cin_pad = _rep0_cin_pad(cin, W) if i == 0 else None
        packed.append(pack_rep_params(p, W, cin_pad=cin_pad))
        cin = C3

    out = bottleneck_forward(x_nchw, packed)
    out = jax.block_until_ready(out)

    ref = bottleneck_reference(x_nchw, logical)
    assert out.shape == (N, C3, H, W), out.shape
    max_err = float(jnp.max(jnp.abs(out - ref)))
    # Kernel uses bf16 MXU operands (and a bf16 intermediate in the padded
    # scratch) with f32 accumulation; reference is pure f32 HIGHEST, so allow
    # bf16-level quantization error.
    assert max_err < 2e-2, f"mismatch vs reference: {max_err}"

    print("KERNEL_OK")
</pallas_src>

<mosaic_0001>
module attributes {stable_mosaic.version = 11 : i64} {
  func.func @_bottleneck_kernel(%arg0: i32, %arg1: memref<2x16x128xbf16, #tpu.memory_space<vmem>>, %arg2: memref<128x128xbf16, #tpu.memory_space<vmem>>, %arg3: memref<1x128xf32, #tpu.memory_space<vmem>>, %arg4: memref<1x128xf32, #tpu.memory_space<vmem>>, %arg5: memref<128x768xbf16, #tpu.memory_space<vmem>>, %arg6: memref<1x256xf32, #tpu.memory_space<vmem>>, %arg7: memref<1x256xf32, #tpu.memory_space<vmem>>, %arg8: memref<256x128xbf16, #tpu.memory_space<vmem>>, %arg9: memref<1x128xf32, #tpu.memory_space<vmem>>, %arg10: memref<1x128xf32, #tpu.memory_space<vmem>>, %arg11: memref<128x768xbf16, #tpu.memory_space<vmem>>, %arg12: memref<1x256xf32, #tpu.memory_space<vmem>>, %arg13: memref<1x256xf32, #tpu.memory_space<vmem>>, %arg14: memref<2x16x256xf32, #tpu.memory_space<vmem>>, %arg15: memref<40x128xbf16, #tpu.memory_space<vmem>>) attributes {dimension_semantics = [#tpu.dimension_semantics<parallel>], iteration_bounds = array<i64: 1>, scalar_prefetch = 0 : i64, scratch_operands = 1 : i64, tpu.core_type = #tpu.core_type<tc>, window_params = [{transform_indices = @transform_0, window_bounds = array<i64: 2, 16, 128>}, {pipeline_mode = #tpu.pipeline_mode<synchronous>, transform_indices = @transform_1, window_bounds = array<i64: 128, 128>}, {pipeline_mode = #tpu.pipeline_mode<synchronous>, transform_indices = @transform_2, window_bounds = array<i64: 1, 128>}, {pipeline_mode = #tpu.pipeline_mode<synchronous>, transform_indices = @transform_3, window_bounds = array<i64: 1, 128>}, {pipeline_mode = #tpu.pipeline_mode<synchronous>, transform_indices = @transform_4, window_bounds = array<i64: 128, 768>}, {pipeline_mode = #tpu.pipeline_mode<synchronous>, transform_indices = @transform_5, window_bounds = array<i64: 1, 256>}, {pipeline_mode = #tpu.pipeline_mode<synchronous>, transform_indices = @transform_6, window_bounds = array<i64: 1, 256>}, {pipeline_mode = #tpu.pipeline_mode<synchronous>, transform_indices = @transform_7, window_bounds = array<i64: 256, 128>}, {pipeline_mode = #tpu.pipeline_mode<synchronous>, transform_indices = @transform_8, window_bounds = array<i64: 1, 128>}, {pipeline_mode = #tpu.pipeline_mode<synchronous>, transform_indices = @transform_9, window_bounds = array<i64: 1, 128>}, {pipeline_mode = #tpu.pipeline_mode<synchronous>, transform_indices = @transform_10, window_bounds = array<i64: 128, 768>}, {pipeline_mode = #tpu.pipeline_mode<synchronous>, transform_indices = @transform_11, window_bounds = array<i64: 1, 256>}, {pipeline_mode = #tpu.pipeline_mode<synchronous>, transform_indices = @transform_12, window_bounds = array<i64: 1, 256>}, {transform_indices = @transform_13, window_bounds = array<i64: 2, 16, 256>}]} {
    %cst = arith.constant 0.000000e+00 : bf16
    %0 = vector.broadcast %cst : bf16 to vector<2x128xbf16>
    %c0 = arith.constant 0 : index
    %c0_0 = arith.constant 0 : index
    %1 = vector.load %arg15[%c0, %c0_0] : memref<40x128xbf16, #tpu.memory_space<vmem>>, vector<2x128xbf16>
    tpu.vector_store %arg15[%c0, %c0_0], %0 {strides = array<i32>} : memref<40x128xbf16, #tpu.memory_space<vmem>>, vector<2x128xbf16>,
    %c18 = arith.constant 18 : index
    %c0_1 = arith.constant 0 : index
    %2 = vector.load %arg15[%c18, %c0_1] : memref<40x128xbf16, #tpu.memory_space<vmem>>, vector<2x128xbf16>
    tpu.vector_store %arg15[%c18, %c0_1], %0 {strides = array<i32>} : memref<40x128xbf16, #tpu.memory_space<vmem>>, vector<2x128xbf16>,
    %c20 = arith.constant 20 : index
    %c0_2 = arith.constant 0 : index
    %3 = vector.load %arg15[%c20, %c0_2] : memref<40x128xbf16, #tpu.memory_space<vmem>>, vector<2x128xbf16>
    tpu.vector_store %arg15[%c20, %c0_2], %0 {strides = array<i32>} : memref<40x128xbf16, #tpu.memory_space<vmem>>, vector<2x128xbf16>,
    %c38 = arith.constant 38 : index
    %c0_3 = arith.constant 0 : index
    %4 = vector.load %arg15[%c38, %c0_3] : memref<40x128xbf16, #tpu.memory_space<vmem>>, vector<2x128xbf16>
    tpu.vector_store %arg15[%c38, %c0_3], %0 {strides = array<i32>} : memref<40x128xbf16, #tpu.memory_space<vmem>>, vector<2x128xbf16>,
    %c0_4 = arith.constant 0 : index
    %c0_5 = arith.constant 0 : index
    %c0_6 = arith.constant 0 : index
    %5 = vector.load %arg1[%c0_4, %c0_5, %c0_6] : memref<2x16x128xbf16, #tpu.memory_space<vmem>>, vector<2x16x128xbf16>
    %6 = vector.shape_cast %5 : vector<2x16x128xbf16> to vector<32x128xbf16>
    %c0_7 = arith.constant 0 : index
    %c0_8 = arith.constant 0 : index
    %7 = vector.load %arg2[%c0_7, %c0_8] : memref<128x128xbf16, #tpu.memory_space<vmem>>, vector<128x128xbf16>
    %cst_9 = arith.constant dense<0.000000e+00> : vector<32x128xf32>
    %8 = tpu.matmul %6, %7, %cst_9 {dimension_numbers = #tpu.dot_dimension_numbers<[1], [0], [0], [1], [0, 0, 1, 1], [], []>} : vector<32x128xbf16>, vector<128x128xbf16>, vector<32x128xf32> -> vector<32x128xf32>
    %c0_10 = arith.constant 0 : index
    %c0_11 = arith.constant 0 : index
    %9 = vector.load %arg3[%c0_10, %c0_11] : memref<1x128xf32, #tpu.memory_space<vmem>>, vector<1x128xf32>
    %10 = vector.broadcast %9 : vector<1x128xf32> to vector<32x128xf32>
    %11 = arith.mulf %8, %10 : vector<32x128xf32>
    %c0_12 = arith.constant 0 : index
    %c0_13 = arith.constant 0 : index
    %12 = vector.load %arg4[%c0_12, %c0_13] : memref<1x128xf32, #tpu.memory_space<vmem>>, vector<1x128xf32>
    %13 = vector.broadcast %12 : vector<1x128xf32> to vector<32x128xf32>
    %14 = arith.addf %11, %13 : vector<32x128xf32>
    %15 = arith.negf %14 : vector<32x128xf32>
    %16 = math.exp %15 : vector<32x128xf32>
    %cst_14 = arith.constant 1.000000e+00 : f32
    %17 = vector.broadcast %cst_14 : f32 to vector<32x128xf32>
    %18 = arith.addf %17, %16 : vector<32x128xf32>
    %19 = arith.divf %17, %18 : vector<32x128xf32>
    %20 = arith.mulf %14, %19 : vector<32x128xf32>
    %21 = arith.truncf %20 : vector<32x128xf32> to vector<32x128xbf16>
    %22 = vector.extract_strided_slice %21 {offsets = [0, 0], sizes = [16, 128], strides = [1, 1]} : vector<32x128xbf16> to vector<16x128xbf16>
    %c2 = arith.constant 2 : index
    %c0_15 = arith.constant 0 : index
    %23 = vector.load %arg15[%c2, %c0_15] : memref<40x128xbf16, #tpu.memory_space<vmem>>, vector<16x128xbf16>
    tpu.vector_store %arg15[%c2, %c0_15], %22 {strides = array<i32>} : memref<40x128xbf16, #tpu.memory_space<vmem>>, vector<16x128xbf16>,
    %24 = vector.extract_strided_slice %21 {offsets = [16, 0], sizes = [16, 128], strides = [1, 1]} : vector<32x128xbf16> to vector<16x128xbf16>
    %c22 = arith.constant 22 : index
    %c0_16 = arith.constant 0 : index
    %25 = vector.load %arg15[%c22, %c0_16] : memref<40x128xbf16, #tpu.memory_space<vmem>>, vector<16x128xbf16>
    tpu.vector_store %arg15[%c22, %c0_16], %24 {strides = array<i32>} : memref<40x128xbf16, #tpu.memory_space<vmem>>, vector<16x128xbf16>,
    %c0_17 = arith.constant 0 : index
    %c0_18 = arith.constant 0 : index
    %26 = vector.load %arg15[%c0_17, %c0_18] : memref<40x128xbf16, #tpu.memory_space<vmem>>, vector<40x128xbf16>
    %c0_19 = arith.constant 0 : index
    %c0_20 = arith.constant 0 : index
    %27 = vector.load %arg5[%c0_19, %c0_20] : memref<128x768xbf16, #tpu.memory_space<vmem>>, vector<128x768xbf16>
    %cst_21 = arith.constant dense<0.000000e+00> : vector<40x768xf32>
    %28 = tpu.matmul %26, %27, %cst_21 {dimension_numbers = #tpu.dot_dimension_numbers<[1], [0], [0], [1], [0, 0, 1, 1], [], []>} : vector<40x128xbf16>, vector<128x768xbf16>, vector<40x768xf32> -> vector<40x768xf32>
    %29 = vector.extract_strided_slice %28 {offsets = [1, 0], sizes = [16, 256], strides = [1, 1]} : vector<40x768xf32> to vector<16x256xf32>
    %30 = vector.extract_strided_slice %28 {offsets = [2, 256], sizes = [16, 256], strides = [1, 1]} : vector<40x768xf32> to vector<16x256xf32>
    %31 = arith.addf %29, %30 : vector<16x256xf32>
    %32 = vector.extract_strided_slice %28 {offsets = [3, 512], sizes = [16, 256], strides = [1, 1]} : vector<40x768xf32> to vector<16x256xf32>
    %33 = arith.addf %31, %32 : vector<16x256xf32>
    %34 = vector.extract_strided_slice %28 {offsets = [21, 0], sizes = [16, 256], strides = [1, 1]} : vector<40x768xf32> to vector<16x256xf32>
    %35 = vector.extract_strided_slice %28 {offsets = [22, 256], sizes = [16, 256], strides = [1, 1]} : vector<40x768xf32> to vector<16x256xf32>
    %36 = arith.addf %34, %35 : vector<16x256xf32>
    %37 = vector.extract_strided_slice %28 {offsets = [23, 512], sizes = [16, 256], strides = [1, 1]} : vector<40x768xf32> to vector<16x256xf32>
    %38 = arith.addf %36, %37 : vector<16x256xf32>
    %39 = tpu.concatenate %33, %38 in 0 : vector<16x256xf32>, vector<16x256xf32> -> vector<32x256xf32>
    %c0_22 = arith.constant 0 : index
    %c0_23 = arith.constant 0 : index
    %40 = vector.load %arg6[%c0_22, %c0_23] : memref<1x256xf32, #tpu.memory_space<vmem>>, vector<1x256xf32>
    %41 = vector.broadcast %40 : vector<1x256xf32> to vector<32x256xf32>
    %42 = arith.mulf %39, %41 : vector<32x256xf32>
    %c0_24 = arith.constant 0 : index
    %c0_25 = arith.constant 0 : index
    %43 = vector.load %arg7[%c0_24, %c0_25] : memref<1x256xf32, #tpu.memory_space<vmem>>, vector<1x256xf32>
    %44 = vector.broadcast %43 : vector<1x256xf32> to vector<32x256xf32>
    %45 = arith.addf %42, %44 : vector<32x256xf32>
    %46 = arith.negf %45 : vector<32x256xf32>
    %47 = math.exp %46 : vector<32x256xf32>
    %cst_26 = arith.constant 1.000000e+00 : f32
    %48 = vector.broadcast %cst_26 : f32 to vector<32x256xf32>
    %49 = arith.addf %48, %47 : vector<32x256xf32>
    %50 = arith.divf %48, %49 : vector<32x256xf32>
    %51 = arith.mulf %45, %50 : vector<32x256xf32>
    %52 = arith.truncf %51 : vector<32x256xf32> to vector<32x256xbf16>
    %c0_27 = arith.constant 0 : index
    %c0_28 = arith.constant 0 : index
    %53 = vector.load %arg8[%c0_27, %c0_28] : memref<256x128xbf16, #tpu.memory_space<vmem>>, vector<256x128xbf16>
    %cst_29 = arith.constant dense<0.000000e+00> : vector<32x128xf32>
    %54 = tpu.matmul %52, %53, %cst_29 {dimension_numbers = #tpu.dot_dimension_numbers<[1], [0], [0], [1], [0, 0, 1, 1], [], []>} : vector<32x256xbf16>, vector<256x128xbf16>, vector<32x128xf32> -> vector<32x128xf32>
    %c0_30 = arith.constant 0 : index
    %c0_31 = arith.constant 0 : index
    %55 = vector.load %arg9[%c0_30, %c0_31] : memref<1x128xf32, #tpu.memory_space<vmem>>, vector<1x128xf32>
    %56 = vector.broadcast %55 : vector<1x128xf32> to vector<32x128xf32>
    %57 = arith.mulf %54, %56 : vector<32x128xf32>
    %c0_32 = arith.constant 0 : index
    %c0_33 = arith.constant 0 : index
    %58 = vector.load %arg10[%c0_32, %c0_33] : memref<1x128xf32, #tpu.memory_space<vmem>>, vector<1x128xf32>
    %59 = vector.broadcast %58 : vector<1x128xf32> to vector<32x128xf32>
    %60 = arith.addf %57, %59 : vector<32x128xf32>
    %61 = arith.negf %60 : vector<32x128xf32>
    %62 = math.exp %61 : vector<32x128xf32>
    %cst_34 = arith.constant 1.000000e+00 : f32
    %63 = vector.broadcast %cst_34 : f32 to vector<32x128xf32>
    %64 = arith.addf %63, %62 : vector<32x128xf32>
    %65 = arith.divf %63, %64 : vector<32x128xf32>
    %66 = arith.mulf %60, %65 : vector<32x128xf32>
    %67 = arith.truncf %66 : vector<32x128xf32> to vector<32x128xbf16>
    %68 = vector.extract_strided_slice %67 {offsets = [0, 0], sizes = [16, 128], strides = [1, 1]} : vector<32x128xbf16> to vector<16x128xbf16>
    %c2_35 = arith.constant 2 : index
    %c0_36 = arith.constant 0 : index
    %69 = vector.load %arg15[%c2_35, %c0_36] : memref<40x128xbf16, #tpu.memory_space<vmem>>, vector<16x128xbf16>
    tpu.vector_store %arg15[%c2_35, %c0_36], %68 {strides = array<i32>} : memref<40x128xbf16, #tpu.memory_space<vmem>>, vector<16x128xbf16>,
    %70 = vector.extract_strided_slice %67 {offsets = [16, 0], sizes = [16, 128], strides = [1, 1]} : vector<32x128xbf16> to vector<16x128xbf16>
    %c22_37 = arith.constant 22 : index
    %c0_38 = arith.constant 0 : index
    %71 = vector.load %arg15[%c22_37, %c0_38] : memref<40x128xbf16, #tpu.memory_space<vmem>>, vector<16x128xbf16>
    tpu.vector_store %arg15[%c22_37, %c0_38], %70 {strides = array<i32>} : memref<40x128xbf16, #tpu.memory_space<vmem>>, vector<16x128xbf16>,
    %c0_39 = arith.constant 0 : index
    %c0_40 = arith.constant 0 : index
    %72 = vector.load %arg15[%c0_39, %c0_40] : memref<40x128xbf16, #tpu.memory_space<vmem>>, vector<40x128xbf16>
    %c0_41 = arith.constant 0 : index
    %c0_42 = arith.constant 0 : index
    %73 = vector.load %arg11[%c0_41, %c0_42] : memref<128x768xbf16, #tpu.memory_space<vmem>>, vector<128x768xbf16>
    %cst_43 = arith.constant dense<0.000000e+00> : vector<40x768xf32>
    %74 = tpu.matmul %72, %73, %cst_43 {dimension_numbers = #tpu.dot_dimension_numbers<[1], [0], [0], [1], [0, 0, 1, 1], [], []>} : vector<40x128xbf16>, vector<128x768xbf16>, vector<40x768xf32> -> vector<40x768xf32>
    %75 = vector.extract_strided_slice %74 {offsets = [1, 0], sizes = [16, 256], strides = [1, 1]} : vector<40x768xf32> to vector<16x256xf32>
    %76 = vector.extract_strided_slice %74 {offsets = [2, 256], sizes = [16, 256], strides = [1, 1]} : vector<40x768xf32> to vector<16x256xf32>
    %77 = arith.addf %75, %76 : vector<16x256xf32>
    %78 = vector.extract_strided_slice %74 {offsets = [3, 512], sizes = [16, 256], strides = [1, 1]} : vector<40x768xf32> to vector<16x256xf32>
    %79 = arith.addf %77, %78 : vector<16x256xf32>
    %80 = vector.extract_strided_slice %74 {offsets = [21, 0], sizes = [16, 256], strides = [1, 1]} : vector<40x768xf32> to vector<16x256xf32>
    %81 = vector.extract_strided_slice %74 {offsets = [22, 256], sizes = [16, 256], strides = [1, 1]} : vector<40x768xf32> to vector<16x256xf32>
    %82 = arith.addf %80, %81 : vector<16x256xf32>
    %83 = vector.extract_strided_slice %74 {offsets = [23, 512], sizes = [16, 256], strides = [1, 1]} : vector<40x768xf32> to vector<16x256xf32>
    %84 = arith.addf %82, %83 : vector<16x256xf32>
    %85 = tpu.concatenate %79, %84 in 0 : vector<16x256xf32>, vector<16x256xf32> -> vector<32x256xf32>
    %c0_44 = arith.constant 0 : index
    %c0_45 = arith.constant 0 : index
    %86 = vector.load %arg12[%c0_44, %c0_45] : memref<1x256xf32, #tpu.memory_space<vmem>>, vector<1x256xf32>
    %87 = vector.broadcast %86 : vector<1x256xf32> to vector<32x256xf32>
    %88 = arith.mulf %85, %87 : vector<32x256xf32>
    %c0_46 = arith.constant 0 : index
    %c0_47 = arith.constant 0 : index
    %89 = vector.load %arg13[%c0_46, %c0_47] : memref<1x256xf32, #tpu.memory_space<vmem>>, vector<1x256xf32>
    %90 = vector.broadcast %89 : vector<1x256xf32> to vector<32x256xf32>
    %91 = arith.addf %88, %90 : vector<32x256xf32>
    %92 = arith.negf %91 : vector<32x256xf32>
    %93 = math.exp %92 : vector<32x256xf32>
    %cst_48 = arith.constant 1.000000e+00 : f32
    %94 = vector.broadcast %cst_48 : f32 to vector<32x256xf32>
    %95 = arith.addf %94, %93 : vector<32x256xf32>
    %96 = arith.divf %94, %95 : vector<32x256xf32>
    %97 = arith.mulf %91, %96 : vector<32x256xf32>
    %98 = arith.addf %97, %51 : vector<32x256xf32>
    %99 = vector.shape_cast %98 : vector<32x256xf32> to vector<2x16x256xf32>
    %c0_49 = arith.constant 0 : index
    %c0_50 = arith.constant 0 : index
    %c0_51 = arith.constant 0 : index
    %100 = vector.load %arg14[%c0_49, %c0_50, %c0_51] : memref<2x16x256xf32, #tpu.memory_space<vmem>>, vector<2x16x256xf32>
    tpu.vector_store %arg14[%c0_49, %c0_50, %c0_51], %99 {strides = array<i32>} : memref<2x16x256xf32, #tpu.memory_space<vmem>>, vector<2x16x256xf32>,
    return
  }
  func.func @transform_0(%arg0: i32) -> (i32, i32, i32) {
    %c0_i32 = arith.constant 0 : i32
    %c0_i32_0 = arith.constant 0 : i32
    %c0_i32_1 = arith.constant 0 : i32
    return %arg0, %c0_i32, %c0_i32_0 : i32, i32, i32
  }
  func.func @transform_1(%arg0: i32) -> (i32, i32) {
    %c0_i32 = arith.constant 0 : i32
    %c0_i32_0 = arith.constant 0 : i32
    %c0_i32_1 = arith.constant 0 : i32
    return %c0_i32, %c0_i32_0 : i32, i32
  }
  func.func @transform_2(%arg0: i32) -> (i32, i32) {
    %c0_i32 = arith.constant 0 : i32
    %c0_i32_0 = arith.constant 0 : i32
    %c0_i32_1 = arith.constant 0 : i32
    return %c0_i32, %c0_i32_0 : i32, i32
  }
  func.func @transform_3(%arg0: i32) -> (i32, i32) {
    %c0_i32 = arith.constant 0 : i32
    %c0_i32_0 = arith.constant 0 : i32
    %c0_i32_1 = arith.constant 0 : i32
    return %c0_i32, %c0_i32_0 : i32, i32
  }
  func.func @transform_4(%arg0: i32) -> (i32, i32) {
    %c0_i32 = arith.constant 0 : i32
    %c0_i32_0 = arith.constant 0 : i32
    %c0_i32_1 = arith.constant 0 : i32
    return %c0_i32, %c0_i32_0 : i32, i32
  }
  func.func @transform_5(%arg0: i32) -> (i32, i32) {
    %c0_i32 = arith.constant 0 : i32
    %c0_i32_0 = arith.constant 0 : i32
    %c0_i32_1 = arith.constant 0 : i32
    return %c0_i32, %c0_i32_0 : i32, i32
  }
  func.func @transform_6(%arg0: i32) -> (i32, i32) {
    %c0_i32 = arith.constant 0 : i32
    %c0_i32_0 = arith.constant 0 : i32
    %c0_i32_1 = arith.constant 0 : i32
    return %c0_i32, %c0_i32_0 : i32, i32
  }
  func.func @transform_7(%arg0: i32) -> (i32, i32) {
    %c0_i32 = arith.constant 0 : i32
    %c0_i32_0 = arith.constant 0 : i32
    %c0_i32_1 = arith.constant 0 : i32
    return %c0_i32, %c0_i32_0 : i32, i32
  }
  func.func @transform_8(%arg0: i32) -> (i32, i32) {
    %c0_i32 = arith.constant 0 : i32
    %c0_i32_0 = arith.constant 0 : i32
    %c0_i32_1 = arith.constant 0 : i32
    return %c0_i32, %c0_i32_0 : i32, i32
  }
  func.func @transform_9(%arg0: i32) -> (i32, i32) {
    %c0_i32 = arith.constant 0 : i32
    %c0_i32_0 = arith.constant 0 : i32
    %c0_i32_1 = arith.constant 0 : i32
    return %c0_i32, %c0_i32_0 : i32, i32
  }
  func.func @transform_10(%arg0: i32) -> (i32, i32) {
    %c0_i32 = arith.constant 0 : i32
    %c0_i32_0 = arith.constant 0 : i32
    %c0_i32_1 = arith.constant 0 : i32
    return %c0_i32, %c0_i32_0 : i32, i32
  }
  func.func @transform_11(%arg0: i32) -> (i32, i32) {
    %c0_i32 = arith.constant 0 : i32
    %c0_i32_0 = arith.constant 0 : i32
    %c0_i32_1 = arith.constant 0 : i32
    return %c0_i32, %c0_i32_0 : i32, i32
  }
  func.func @transform_12(%arg0: i32) -> (i32, i32) {
    %c0_i32 = arith.constant 0 : i32
    %c0_i32_0 = arith.constant 0 : i32
    %c0_i32_1 = arith.constant 0 : i32
    return %c0_i32, %c0_i32_0 : i32, i32
  }
  func.func @transform_13(%arg0: i32) -> (i32, i32, i32) {
    %c0_i32 = arith.constant 0 : i32
    %c0_i32_0 = arith.constant 0 : i32
    %c0_i32_1 = arith.constant 0 : i32
    return %arg0, %c0_i32, %c0_i32_0 : i32, i32, i32
  }
}

</mosaic_0001>

<llo_original>
// kernel: tpu_custom_call.1
$region0: #{tpu_custom_call.1}
  #allocation0 [shape = 'u32[]', space=smem, size = 0x4, offset = 0x4, fixed_abs, tag = 'smem constant byte address 0x4 - core index']
  #allocation1 [shape = 'u32[144,128]{1,0:T(1,128)}', space=vmem, size = 0x12000, scoped, tag = 'internal scratch']
  #allocation2 [shape = 'bf16[40,128]{1,0:T(8,128)(2,1)}', space=vmem, size = 0x2800, scoped, tag = 'scratch operand']
  %s0 = inlined_call_operand.hbm [shape: bf16[2,16,128], index: 0, kind: input, shape index: {}]
  %s1 = inlined_call_operand.hbm [shape: bf16[128,128], index: 1, kind: input, shape index: {}]
  %s2 = inlined_call_operand.vmem [shape: f32[1,128], index: 2, kind: input, shape index: {}]
  %s3 = inlined_call_operand.vmem [shape: f32[1,128], index: 3, kind: input, shape index: {}]
  %s4 = inlined_call_operand.hbm [shape: bf16[128,768], index: 4, kind: input, shape index: {}]
  %s5 = inlined_call_operand.vmem [shape: f32[1,256], index: 5, kind: input, shape index: {}]
  %s6 = inlined_call_operand.vmem [shape: f32[1,256], index: 6, kind: input, shape index: {}]
  %s7 = inlined_call_operand.hbm [shape: bf16[256,128], index: 7, kind: input, shape index: {}]
  %s8 = inlined_call_operand.vmem [shape: f32[1,128], index: 8, kind: input, shape index: {}]
  %s9 = inlined_call_operand.vmem [shape: f32[1,128], index: 9, kind: input, shape index: {}]
  %s10 = inlined_call_operand.hbm [shape: bf16[128,768], index: 10, kind: input, shape index: {}]
  %s11 = inlined_call_operand.vmem [shape: f32[1,256], index: 11, kind: input, shape index: {}]
  %s12 = inlined_call_operand.vmem [shape: f32[1,256], index: 12, kind: input, shape index: {}]
  %s13 = inlined_call_operand.hbm [shape: f32[2,16,256], index: 13, kind: output, shape index: {}]
  %s14 = sld [smem:[#allocation0]]
  $region82: #{tpu_custom_call.1} parent=0
    _
  %s16 = ssub.s32 1, %s14
  %s17 = scalar_select 0, %s16, %s14
  $region1: #{tpu_custom_call.1} parent=0
    #allocation3 [shape = 'u8[8192]{0}', space=vmem, size = 0x2000, scoped, tag = 'input window, operand 0, single buffered']
    #allocation4 [shape = 's32[1]{0}', space=sflag, size = 0x4, scoped, tag = 'scoped memory for tpu_custom_call.1']
    #allocation5 [shape = 's32[1]{0}', space=sflag, size = 0x4, scoped, tag = 'scoped memory for tpu_custom_call.1']
    #allocation6 [shape = 'u8[32768]{0}', space=vmem, size = 0x8000, scoped, tag = 'input window, operand 1, single buffered']
    #allocation7 [shape = 's32[1]{0}', space=sflag, size = 0x4, scoped, tag = 'scoped memory for tpu_custom_call.1']
    #allocation8 [shape = 'u8[196608]{0}', space=vmem, size = 0x30000, scoped, tag = 'input window, operand 4, single buffered']
    #allocation9 [shape = 'u8[65536]{0}', space=vmem, size = 0x10000, scoped, tag = 'input window, operand 7, single buffered']
    #allocation10 [shape = 's32[1]{0}', space=sflag, size = 0x4, scoped, tag = 'scoped memory for tpu_custom_call.1']
    #allocation11 [shape = 'u8[196608]{0}', space=vmem, size = 0x30000, scoped, tag = 'input window, operand 10, single buffered']
    #allocation12 [shape = 'u8[32768]{0}', space=vmem, size = 0x8000, scoped, tag = 'output window, operand 0, single buffered']
    %18 = vsyncpa [#allocation4], 0
    %19 = vsyncpa [#allocation7], 0
    %20 = vsyncpa [#allocation10], 0
    %21 = vsyncpa [#allocation5], 0
    // Predicated region
    $region2: #{tpu_custom_call.1} parent=1 // pred_check
      _
    $region3: #{tpu_custom_call.1} parent=1 // pred_check_branch
      %23 = sbr.rel (0) target = $region5
    $region4: #{tpu_custom_call.1} parent=1 // pred_region
      %s25 = ssub.s32 256, 256
      %26 = vsyncadd [#allocation4], %s25
      %s27 = sshll.u32 [#allocation3], 4
      %s28 = int_to_ptr.vmem [resolvable:$true] %s27
      %33 = dma.hbm_to_vmem [thread:$0]  %s0, 256, %s28, [#allocation4], 64, 64, 4
    $region5: #{tpu_custom_call.1} parent=1 // pred_fallthru
      _
    // Predicated region
    $region6: #{tpu_custom_call.1} parent=1 // pred_check
      _
    $region7: #{tpu_custom_call.1} parent=1 // pred_check_branch
      %35 = sbr.rel (0) target = $region9
    $region8: #{tpu_custom_call.1} parent=1 // pred_region
      %s37 = ssub.s32 1024, 1024
      %38 = vsyncadd [#allocation7], %s37
      %s39 = sshll.u32 [#allocation6], 4
      %s40 = int_to_ptr.vmem [resolvable:$true] %s39
      %45 = dma.hbm_to_vmem [thread:$0]  %s1, 1024, %s40, [#allocation7], 64, 64, 4
    $region9: #{tpu_custom_call.1} parent=1 // pred_fallthru
      _
    // Predicated region
    $region10: #{tpu_custom_call.1} parent=1 // pred_check
      _
    $region11: #{tpu_custom_call.1} parent=1 // pred_check_branch
      %47 = sbr.rel (0) target = $region13
    $region12: #{tpu_custom_call.1} parent=1 // pred_region
      _
    $region13: #{tpu_custom_call.1} parent=1 // pred_fallthru
      _
    // Predicated region
    $region14: #{tpu_custom_call.1} parent=1 // pred_check
      _
    $region15: #{tpu_custom_call.1} parent=1 // pred_check_branch
      %49 = sbr.rel (0) target = $region17
    $region16: #{tpu_custom_call.1} parent=1 // pred_region
      _
    $region17: #{tpu_custom_call.1} parent=1 // pred_fallthru
      _
    // Predicated region
    $region18: #{tpu_custom_call.1} parent=1 // pred_check
      _
    $region19: #{tpu_custom_call.1} parent=1 // pred_check_branch
      %51 = sbr.rel (0) target = $region21
    $region20: #{tpu_custom_call.1} parent=1 // pred_region
      %s53 = ssub.s32 6144, 6144
      %54 = vsyncadd [#allocation7], %s53
      %s55 = sshll.u32 [#allocation8], 4
      %s56 = int_to_ptr.vmem [resolvable:$true] %s55
      %61 = dma.hbm_to_vmem [thread:$0]  %s4, 6144, %s56, [#allocation7], 384, 384, 24
    $region21: #{tpu_custom_call.1} parent=1 // pred_fallthru
      _
    // Predicated region
    $region22: #{tpu_custom_call.1} parent=1 // pred_check
      _
    $region23: #{tpu_custom_call.1} parent=1 // pred_check_branch
      %63 = sbr.rel (0) target = $region25
    $region24: #{tpu_custom_call.1} parent=1 // pred_region
      _
    $region25: #{tpu_custom_call.1} parent=1 // pred_fallthru
      _
    // Predicated region
    $region26: #{tpu_custom_call.1} parent=1 // pred_check
      _
    $region27: #{tpu_custom_call.1} parent=1 // pred_check_branch
      %65 = sbr.rel (0) target = $region29
    $region28: #{tpu_custom_call.1} parent=1 // pred_region
      _
    $region29: #{tpu_custom_call.1} parent=1 // pred_fallthru
      _
    // Predicated region
    $region30: #{tpu_custom_call.1} parent=1 // pred_check
      _
    $region31: #{tpu_custom_call.1} parent=1 // pred_check_branch
      %67 = sbr.rel (0) target = $region33
    $region32: #{tpu_custom_call.1} parent=1 // pred_region
      %s69 = ssub.s32 2048, 2048
      %70 = vsyncadd [#allocation10], %s69
      %s71 = sshll.u32 [#allocation9], 4
      %s72 = int_to_ptr.vmem [resolvable:$true] %s71
      %77 = dma.hbm_to_vmem [thread:$0]  %s7, 2048, %s72, [#allocation10], 64, 64, 4
    $region33: #{tpu_custom_call.1} parent=1 // pred_fallthru
      _
    // Predicated region
    $region34: #{tpu_custom_call.1} parent=1 // pred_check
      _
    $region35: #{tpu_custom_call.1} parent=1 // pred_check_branch
      %79 = sbr.rel (0) target = $region37
    $region36: #{tpu_custom_call.1} parent=1 // pred_region
      _
    $region37: #{tpu_custom_call.1} parent=1 // pred_fallthru
      _
    // Predicated region
    $region38: #{tpu_custom_call.1} parent=1 // pred_check
      _
    $region39: #{tpu_custom_call.1} parent=1 // pred_check_branch
      %81 = sbr.rel (0) target = $region41
    $region40: #{tpu_custom_call.1} parent=1 // pred_region
      _
    $region41: #{tpu_custom_call.1} parent=1 // pred_fallthru
      _
    // Predicated region
    $region42: #{tpu_custom_call.1} parent=1 // pred_check
      _
    $region43: #{tpu_custom_call.1} parent=1 // pred_check_branch
      %83 = sbr.rel (0) target = $region45
    $region44: #{tpu_custom_call.1} parent=1 // pred_region
      %s85 = ssub.s32 6144, 6144
      %86 = vsyncadd [#allocation10], %s85
      %s87 = sshll.u32 [#allocation11], 4
      %s88 = int_to_ptr.vmem [resolvable:$true] %s87
      %93 = dma.hbm_to_vmem [thread:$0]  %s10, 6144, %s88, [#allocation10], 384, 384, 24
    $region45: #{tpu_custom_call.1} parent=1 // pred_fallthru
      _
    // Predicated region
    $region46: #{tpu_custom_call.1} parent=1 // pred_check
      _
    $region47: #{tpu_custom_call.1} parent=1 // pred_check_branch
      %95 = sbr.rel (0) target = $region49
    $region48: #{tpu_custom_call.1} parent=1 // pred_region
      _
    $region49: #{tpu_custom_call.1} parent=1 // pred_fallthru
      _
    // Predicated region
    $region50: #{tpu_custom_call.1} parent=1 // pred_check
      _
    $region51: #{tpu_custom_call.1} parent=1 // pred_check_branch
      %97 = sbr.rel (0) target = $region53
    $region52: #{tpu_custom_call.1} parent=1 // pred_region
      _
    $region53: #{tpu_custom_call.1} parent=1 // pred_fallthru
      _
    // Predicated region
    $region54: #{tpu_custom_call.1} parent=1 // pred_check
      _
    $region55: #{tpu_custom_call.1} parent=1 // pred_check_branch
      %99 = sbr.rel (0) target = $region57
    $region56: #{tpu_custom_call.1} parent=1 // pred_region
      %100 = dma.done [#allocation4], 256
    $region57: #{tpu_custom_call.1} parent=1 // pred_fallthru
      _
    // Predicated region
    $region58: #{tpu_custom_call.1} parent=1 // pred_check
      _
    $region59: #{tpu_custom_call.1} parent=1 // pred_check_branch
      %102 = sbr.rel (0) target = $region61
    $region60: #{tpu_custom_call.1} parent=1 // pred_region
      %103 = dma.done [#allocation7], 1024
    $region61: #{tpu_custom_call.1} parent=1 // pred_fallthru
      _
    // Predicated region
    $region62: #{tpu_custom_call.1} parent=1 // pred_check
      _
    $region63: #{tpu_custom_call.1} parent=1 // pred_check_branch
      %105 = sbr.rel (0) target = $region65
    $region64: #{tpu_custom_call.1} parent=1 // pred_region
      %106 = dma.done [#allocation7], 6144
    $region65: #{tpu_custom_call.1} parent=1 // pred_fallthru
      _
    // Predicated region
    $region66: #{tpu_custom_call.1} parent=1 // pred_check
      _
    $region67: #{tpu_custom_call.1} parent=1 // pred_check_branch
      %108 = sbr.rel (0) target = $region69
    $region68: #{tpu_custom_call.1} parent=1 // pred_region
      %109 = dma.done [#allocation10], 2048
    $region69: #{tpu_custom_call.1} parent=1 // pred_fallthru
      _
    // Predicated region
    $region70: #{tpu_custom_call.1} parent=1 // pred_check
      _
    $region71: #{tpu_custom_call.1} parent=1 // pred_check_branch
      %111 = sbr.rel (0) target = $region73
    $region72: #{tpu_custom_call.1} parent=1 // pred_region
      %112 = dma.done [#allocation10], 6144
    $region73: #{tpu_custom_call.1} parent=1 // pred_fallthru
      _
    %114 = vst [vmem:[#allocation2] sm:$0x1] 0
    %115 = vst [vmem:[#allocation2 + $0x8] sm:$0x2] 0
    %116 = vst [vmem:[#allocation2 + $0x8] sm:$0x4] 0
    %117 = vst [vmem:[#allocation2 + $0x10] sm:$0x8] 0
    %v118 = vld [vmem:[#allocation3] sm:$0xf]
    %v119 = vld [vmem:[#allocation3 + $0x4] sm:$0xf]
    %v120 = vld [vmem:[#allocation3 + $0x8] sm:$0xf]
    %v121 = vld [vmem:[#allocation3 + $0xc] sm:$0xf]
    %v122 = vld [vmem:[#allocation6] sm:$0xf]
    %v123 = vld [vmem:[#allocation6 + $0x4] sm:$0xf]
    %v124 = vld [vmem:[#allocation6 + $0x8] sm:$0xf]
    %v125 = vld [vmem:[#allocation6 + $0xc] sm:$0xf]
    %v126 = vld [vmem:[#allocation6 + $0x10] sm:$0xf]
    %v127 = vld [vmem:[#allocation6 + $0x14] sm:$0xf]
    %v128 = vld [vmem:[#allocation6 + $0x18] sm:$0xf]
    %v129 = vld [vmem:[#allocation6 + $0x1c] sm:$0xf]
    %v130 = vld [vmem:[#allocation6 + $0x20] sm:$0xf]
    %v131 = vld [vmem:[#allocation6 + $0x24] sm:$0xf]
    %v132 = vld [vmem:[#allocation6 + $0x28] sm:$0xf]
    %v133 = vld [vmem:[#allocation6 + $0x2c] sm:$0xf]
    %v134 = vld [vmem:[#allocation6 + $0x30] sm:$0xf]
    %v135 = vld [vmem:[#allocation6 + $0x34] sm:$0xf]
    %v136 = vld [vmem:[#allocation6 + $0x38] sm:$0xf]
    %v137 = vld [vmem:[#allocation6 + $0x3c] sm:$0xf]
    %v142 = vunpack.c.l.b16 %v118
    %v143 = vunpack.c.l.b16 %v119
    %v144 = vunpack.c.l.b16 %v120
    %v145 = vunpack.c.l.b16 %v121
    %v146 = vpack.c.b16 %v143, %v142
    %v147 = vpack.c.b16 %v145, %v144
    %v166 = vunpack.c.l.b16 %v122
    %v167 = vunpack.c.l.b16 %v123
    %v168 = vunpack.c.l.b16 %v124
    %v169 = vunpack.c.l.b16 %v125
    %v170 = vunpack.c.l.b16 %v126
    %v171 = vunpack.c.l.b16 %v127
    %v172 = vunpack.c.l.b16 %v128
    %v173 = vunpack.c.l.b16 %v129
    %v174 = vunpack.c.l.b16 %v130
    %v175 = vunpack.c.l.b16 %v131
    %v176 = vunpack.c.l.b16 %v132
    %v177 = vunpack.c.l.b16 %v133
    %v178 = vunpack.c.l.b16 %v134
    %v179 = vunpack.c.l.b16 %v135
    %v180 = vunpack.c.l.b16 %v136
    %v181 = vunpack.c.l.b16 %v137
    %v182 = vpack.c.b16 %v167, %v166
    %v183 = vpack.c.b16 %v169, %v168
    %v184 = vpack.c.b16 %v171, %v170
    %v185 = vpack.c.b16 %v173, %v172
    %v186 = vpack.c.b16 %v175, %v174
    %v187 = vpack.c.b16 %v177, %v176
    %v188 = vpack.c.b16 %v179, %v178
    %v189 = vpack.c.b16 %v181, %v180
    %198 = vmatprep.subr.bf16.mxu0 0
    %199 = vmatpush1.bf16.msra.mxu0 %v182
    %200 = vmatprep.subr.bf16.mxu0 0
    %201 = vmatpush1.bf16.msra.mxu0 %v183
    %202 = vmatprep.subr.bf16.mxu0 0
    %203 = vmatpush1.bf16.msra.mxu0 %v184
    %204 = vmatprep.subr.bf16.mxu0 0
    %205 = vmatpush1.bf16.msra.mxu0 %v185
    %206 = vmatprep.subr.bf16.mxu0 0
    %207 = vmatpush1.bf16.msra.mxu0 %v186
    %208 = vmatprep.subr.bf16.mxu0 0
    %209 = vmatpush1.bf16.msra.mxu0 %v187
    %210 = vmatprep.subr.bf16.mxu0 0
    %211 = vmatpush1.bf16.msra.mxu0 %v188
    %212 = vmatprep.subr.bf16.mxu0 0
    %213 = vmatpush1.bf16.msra.mxu0 %v189
    %214 = vmatprep.subr.bf16.mxu0 0
    %215 = vmatpush1.bf16.msra.mxu0 0
    %216 = vmatprep.subr.bf16.mxu0 0
    %217 = vmatpush1.bf16.msra.mxu0 0
    %218 = vmatprep.subr.bf16.mxu0 0
    %219 = vmatpush1.bf16.msra.mxu0 0
    %220 = vmatprep.subr.bf16.mxu0 0
    %221 = vmatpush1.bf16.msra.mxu0 0
    %222 = vmatprep.subr.bf16.mxu0 0
    %223 = vmatpush1.bf16.msra.mxu0 0
    %224 = vmatprep.subr.bf16.mxu0 0
    %225 = vmatpush1.bf16.msra.mxu0 0
    %226 = vmatprep.subr.bf16.mxu0 0
    %227 = vmatpush1.bf16.msra.mxu0 0
    %228 = vmatprep.subr.bf16.mxu0 0
    %229 = vmatpush1.bf16.msra.mxu0 0
    %230 = vmatprep.mubr.bf16.mxu0 0
    %231 = vmatmul.mubr.bf16.gmra.mrb[0].mxu0 %v146
    %v232 = vpop.f32.mrb[0].mxu0
    %v233 = vadd.f32 0.0, %v232
    %v234 = vpop.f32.mrb[0].mxu0
    %v235 = vpop.f32.mrb[0].mxu0
    %v236 = vadd.f32 0.0, %v235
    %v237 = vpop.f32.mrb[0].mxu0
    %238 = vmatprep.mubr.bf16.mxu0 0
    %239 = vmatmul.mubr.bf16.gmra.mrb[0].mxu0 %v147
    %v240 = vpop.f32.mrb[0].mxu0
    %v241 = vadd.f32 0.0, %v240
    %v242 = vpop.f32.mrb[0].mxu0
    %v243 = vpop.f32.mrb[0].mxu0
    %v244 = vadd.f32 0.0, %v243
    %v245 = vpop.f32.mrb[0].mxu0
    %246 = vdwg.mxu0
    %v247 = vld [vmem:[%s2] sm:$0x1]
    %v249 = vlaneseq
    %v250 = vshrl.u32 %v249, 7
    %v251 = vsub.s32 0, %v250
    %v252 = vrot.slane %v247, %v251
    %v254 = vmul.f32 %v233, %v252
    %v255 = vmul.f32 %v236, %v252
    %v256 = vmul.f32 %v241, %v252
    %v257 = vmul.f32 %v244, %v252
    %v258 = vld [vmem:[%s3] sm:$0x1]
    %v260 = vlaneseq
    %v261 = vshrl.u32 %v260, 7
    %v262 = vsub.s32 0, %v261
    %v263 = vrot.slane %v258, %v262
    %v265 = vadd.f32 %v254, %v263
    %v266 = vadd.f32 %v255, %v263
    %v267 = vadd.f32 %v256, %v263
    %v268 = vadd.f32 %v257, %v263
    %v269 = vxor.u32 %v265, 2147483648
    %v270 = vxor.u32 %v266, 2147483648
    %v271 = vxor.u32 %v267, 2147483648
    %v272 = vxor.u32 %v268, 2147483648
    %v273 = vmul.f32 %v269, 1.442695
    %v274 = vpow.pop %v273
    %v275 = vmul.f32 %v270, 1.442695
    %v276 = vpow.pop %v275
    %v277 = vmul.f32 %v271, 1.442695
    %v278 = vpow.pop %v277
    %v279 = vmul.f32 %v272, 1.442695
    %v280 = vpow.pop %v279
    %v281 = vadd.f32 %v274, 1.0
    %v282 = vadd.f32 %v276, 1.0
    %v283 = vadd.f32 %v278, 1.0
    %v284 = vadd.f32 %v280, 1.0
    %v285 = vrcp.pop %v281
    %v286 = vmul.f32 1.0, %v285
    %v287 = vrcp.pop %v282
    %v288 = vmul.f32 1.0, %v287
    %v289 = vrcp.pop %v283
    %v290 = vmul.f32 1.0, %v289
    %v291 = vrcp.pop %v284
    %v292 = vmul.f32 1.0, %v291
    %v293 = vmul.f32 %v265, %v286
    %v294 = vmul.f32 %v266, %v288
    %v295 = vmul.f32 %v267, %v290
    %v296 = vmul.f32 %v268, %v292
    %v297 = vpack.c.bf16 %v294, %v293
    %v298 = vpack.c.bf16 %v296, %v295
    %v300 = vunpack.c.l.b16 %v297
    %v301 = vunpack.c.h.b16 %v297
    %v302 = vpack.c.b16 %v300, %v300
    %v303 = vpack.c.b16 %v301, %v301
    %vm304 = vcmask 1040384
    %vm305 = vcmask 1044484
    %vm306 = vmor %vm304, %vm305
    %v307 = vrot.slane %v302, 7
    %v308 = vrot.slane %v307, 4
    %v309 = vrot.slane %v303, 7
    %v310 = vsel %vm306, %v308, %v309
    %v311 = vrot.slane %v309, 4
    %315 = vst [vmem:[#allocation2] sm:$0xe] %v307
    %316 = vst [vmem:[#allocation2 + $0x4] sm:$0xf] %v310
    %317 = vst [vmem:[#allocation2 + $0x8] sm:$0x1] %v311
    %v319 = vunpack.c.l.b16 %v298
    %v320 = vunpack.c.h.b16 %v298
    %v321 = vpack.c.b16 %v319, %v319
    %v322 = vpack.c.b16 %v320, %v320
    %vm323 = vcmask 1042432
    %vm324 = vcmask 1046532
    %vm325 = vmor %vm323, %vm324
    %v326 = vrot.slane %v321, 5
    %v327 = vrot.slane %v326, 4
    %v328 = vrot.slane %v322, 5
    %v329 = vsel %vm325, %v327, %v328
    %v330 = vrot.slane %v328, 4
    %334 = vst [vmem:[#allocation2 + $0x8] sm:$0x8] %v326
    %335 = vst [vmem:[#allocation2 + $0xc] sm:$0xf] %v329
    %336 = vst [vmem:[#allocation2 + $0x10] sm:$0x7] %v330
    %v337 = vld [vmem:[#allocation2] sm:$0xf]
    %v338 = vld [vmem:[#allocation2 + $0x4] sm:$0xf]
    %v339 = vld [vmem:[#allocation2 + $0x8] sm:$0xf]
    %v340 = vld [vmem:[#allocation2 + $0xc] sm:$0xf]
    %v341 = vld [vmem:[#allocation2 + $0x10] sm:$0xf]
    %v342 = vld [vmem:[#allocation8] sm:$0xff]
    %v343 = vld [vmem:[#allocation8 + $0x8] sm:$0xff]
    %v344 = vld [vmem:[#allocation8 + $0x10] sm:$0xff]
    %v345 = vld [vmem:[#allocation8 + $0x18] sm:$0xff]
    %v346 = vld [vmem:[#allocation8 + $0x20] sm:$0xff]
    %v347 = vld [vmem:[#allocation8 + $0x28] sm:$0xff]
    %v348 = vld [vmem:[#allocation8 + $0x30] sm:$0xff]
    %v349 = vld [vmem:[#allocation8 + $0x38] sm:$0xff]
    %v350 = vld [vmem:[#allocation8 + $0x40] sm:$0xff]
    %v351 = vld [vmem:[#allocation8 + $0x48] sm:$0xff]
    %v352 = vld [vmem:[#allocation8 + $0x50] sm:$0xff]
    %v353 = vld [vmem:[#allocation8 + $0x58] sm:$0xff]
    %v354 = vld [vmem:[#allocation8 + $0x60] sm:$0xff]
    %v355 = vld [vmem:[#allocation8 + $0x68] sm:$0xff]
    %v356 = vld [vmem:[#allocation8 + $0x70] sm:$0xff]
    %v357 = vld [vmem:[#allocation8 + $0x78] sm:$0xff]
    %v358 = vld [vmem:[#allocation8 + $0x80] sm:$0xff]
    %v359 = vld [vmem:[#allocation8 + $0x88] sm:$0xff]
    %v360 = vld [vmem:[#allocation8 + $0x90] sm:$0xff]
    %v361 = vld [vmem:[#allocation8 + $0x98] sm:$0xff]
    %v362 = vld [vmem:[#allocation8 + $0xa0] sm:$0xff]
    %v363 = vld [vmem:[#allocation8 + $0xa8] sm:$0xff]
    %v364 = vld [vmem:[#allocation8 + $0xb0] sm:$0xff]
    %v365 = vld [vmem:[#allocation8 + $0xb8] sm:$0xff]
    %v366 = vld [vmem:[#allocation8 + $0xc0] sm:$0xff]
    %v367 = vld [vmem:[#allocation8 + $0xc8] sm:$0xff]
    %v368 = vld [vmem:[#allocation8 + $0xd0] sm:$0xff]
    %v369 = vld [vmem:[#allocation8 + $0xd8] sm:$0xff]
    %v370 = vld [vmem:[#allocation8 + $0xe0] sm:$0xff]
    %v371 = vld [vmem:[#allocation8 + $0xe8] sm:$0xff]
    %v372 = vld [vmem:[#allocation8 + $0xf0] sm:$0xff]
    %v373 = vld [vmem:[#allocation8 + $0xf8] sm:$0xff]
    %v374 = vld [vmem:[#allocation8 + $0x100] sm:$0xff]
    %v375 = vld [vmem:[#allocation8 + $0x108] sm:$0xff]
    %v376 = vld [vmem:[#allocation8 + $0x110] sm:$0xff]
    %v377 = vld [vmem:[#allocation8 + $0x118] sm:$0xff]
    %v378 = vld [vmem:[#allocation8 + $0x120] sm:$0xff]
    %v379 = vld [vmem:[#allocation8 + $0x128] sm:$0xff]
    %v380 = vld [vmem:[#allocation8 + $0x130] sm:$0xff]
    %v381 = vld [vmem:[#allocation8 + $0x138] sm:$0xff]
    %v382 = vld [vmem:[#allocation8 + $0x140] sm:$0xff]
    %v383 = vld [vmem:[#allocation8 + $0x148] sm:$0xff]
    %v384 = vld [vmem:[#allocation8 + $0x150] sm:$0xff]
    %v385 = vld [vmem:[#allocation8 + $0x158] sm:$0xff]
    %v386 = vld [vmem:[#allocation8 + $0x160] sm:$0xff]
    %v387 = vld [vmem:[#allocation8 + $0x168] sm:$0xff]
    %v388 = vld [vmem:[#allocation8 + $0x170] sm:$0xff]
    %v389 = vld [vmem:[#allocation8 + $0x178] sm:$0xff]
    %v395 = vunpack.c.l.b16 %v337
    %v396 = vunpack.c.l.b16 %v338
    %v397 = vunpack.c.l.b16 %v339
    %v398 = vunpack.c.l.b16 %v340
    %v399 = vunpack.c.l.b16 %v341
    %v400 = vpack.c.b16 %v396, %v395
    %v401 = vpack.c.b16 %v398, %v397
    %v402 = vpack.c.b16 %v399, %v399
    %v454 = vunpack.c.l.b16 %v342
    %v455 = vunpack.c.h.b16 %v342
    %v456 = vunpack.c.l.b16 %v343
    %v457 = vunpack.c.h.b16 %v343
    %v458 = vunpack.c.l.b16 %v344
    %v459 = vunpack.c.h.b16 %v344
    %v460 = vunpack.c.l.b16 %v345
    %v461 = vunpack.c.h.b16 %v345
    %v462 = vunpack.c.l.b16 %v346
    %v463 = vunpack.c.h.b16 %v346
    %v464 = vunpack.c.l.b16 %v347
    %v465 = vunpack.c.h.b16 %v347
    %v466 = vunpack.c.l.b16 %v348
    %v467 = vunpack.c.h.b16 %v348
    %v468 = vunpack.c.l.b16 %v349
    %v469 = vunpack.c.h.b16 %v349
    %v470 = vunpack.c.l.b16 %v350
    %v471 = vunpack.c.h.b16 %v350
    %v472 = vunpack.c.l.b16 %v351
    %v473 = vunpack.c.h.b16 %v351
    %v474 = vunpack.c.l.b16 %v352
    %v475 = vunpack.c.h.b16 %v352
    %v476 = vunpack.c.l.b16 %v353
    %v477 = vunpack.c.h.b16 %v353
    %v478 = vunpack.c.l.b16 %v354
    %v479 = vunpack.c.h.b16 %v354
    %v480 = vunpack.c.l.b16 %v355
    %v481 = vunpack.c.h.b16 %v355
    %v482 = vunpack.c.l.b16 %v356
    %v483 = vunpack.c.h.b16 %v356
    %v484 = vunpack.c.l.b16 %v357
    %v485 = vunpack.c.h.b16 %v357
    %v486 = vunpack.c.l.b16 %v358
    %v487 = vunpack.c.h.b16 %v358
    %v488 = vunpack.c.l.b16 %v359
    %v489 = vunpack.c.h.b16 %v359
    %v490 = vunpack.c.l.b16 %v360
    %v491 = vunpack.c.h.b16 %v360
    %v492 = vunpack.c.l.b16 %v361
    %v493 = vunpack.c.h.b16 %v361
    %v494 = vunpack.c.l.b16 %v362
    %v495 = vunpack.c.h.b16 %v362
    %v496 = vunpack.c.l.b16 %v363
    %v497 = vunpack.c.h.b16 %v363
    %v498 = vunpack.c.l.b16 %v364
    %v499 = vunpack.c.h.b16 %v364
    %v500 = vunpack.c.l.b16 %v365
    %v501 = vunpack.c.h.b16 %v365
    %v502 = vunpack.c.l.b16 %v366
    %v503 = vunpack.c.h.b16 %v366
    %v504 = vunpack.c.l.b16 %v367
    %v505 = vunpack.c.h.b16 %v367
    %v506 = vunpack.c.l.b16 %v368
    %v507 = vunpack.c.h.b16 %v368
    %v508 = vunpack.c.l.b16 %v369
    %v509 = vunpack.c.h.b16 %v369
    %v510 = vunpack.c.l.b16 %v370
    %v511 = vunpack.c.h.b16 %v370
    %v512 = vunpack.c.l.b16 %v371
    %v513 = vunpack.c.h.b16 %v371
    %v514 = vunpack.c.l.b16 %v372
    %v515 = vunpack.c.h.b16 %v372
    %v516 = vunpack.c.l.b16 %v373
    %v517 = vunpack.c.h.b16 %v373
    %v518 = vunpack.c.l.b16 %v374
    %v519 = vunpack.c.h.b16 %v374
    %v520 = vunpack.c.l.b16 %v375
    %v521 = vunpack.c.h.b16 %v375
    %v522 = vunpack.c.l.b16 %v376
    %v523 = vunpack.c.h.b16 %v376
    %v524 = vunpack.c.l.b16 %v377
    %v525 = vunpack.c.h.b16 %v377
    %v526 = vunpack.c.l.b16 %v378
    %v527 = vunpack.c.h.b16 %v378
    %v528 = vunpack.c.l.b16 %v379
    %v529 = vunpack.c.h.b16 %v379
    %v530 = vunpack.c.l.b16 %v380
    %v531 = vunpack.c.h.b16 %v380
    %v532 = vunpack.c.l.b16 %v381
    %v533 = vunpack.c.h.b16 %v381
    %v534 = vunpack.c.l.b16 %v382
    %v535 = vunpack.c.h.b16 %v382
    %v536 = vunpack.c.l.b16 %v383
    %v537 = vunpack.c.h.b16 %v383
    %v538 = vunpack.c.l.b16 %v384
    %v539 = vunpack.c.h.b16 %v384
    %v540 = vunpack.c.l.b16 %v385
    %v541 = vunpack.c.h.b16 %v385
    %v542 = vunpack.c.l.b16 %v386
    %v543 = vunpack.c.h.b16 %v386
    %v544 = vunpack.c.l.b16 %v387
    %v545 = vunpack.c.h.b16 %v387
    %v546 = vunpack.c.l.b16 %v388
    %v547 = vunpack.c.h.b16 %v388
    %v548 = vunpack.c.l.b16 %v389
    %v549 = vunpack.c.h.b16 %v389
    %v550 = vpack.c.b16 %v460, %v454
    %v551 = vpack.c.b16 %v461, %v455
    %v552 = vpack.c.b16 %v462, %v456
    %v553 = vpack.c.b16 %v463, %v457
    %v554 = vpack.c.b16 %v464, %v458
    %v555 = vpack.c.b16 %v465, %v459
    %v556 = vpack.c.b16 %v472, %v466
    %v557 = vpack.c.b16 %v473, %v467
    %v558 = vpack.c.b16 %v474, %v468
    %v559 = vpack.c.b16 %v475, %v469
    %v560 = vpack.c.b16 %v476, %v470
    %v561 = vpack.c.b16 %v477, %v471
    %v562 = vpack.c.b16 %v484, %v478
    %v563 = vpack.c.b16 %v485, %v479
    %v564 = vpack.c.b16 %v486, %v480
    %v565 = vpack.c.b16 %v487, %v481
    %v566 = vpack.c.b16 %v488, %v482
    %v567 = vpack.c.b16 %v489, %v483
    %v568 = vpack.c.b16 %v496, %v490
    %v569 = vpack.c.b16 %v497, %v491
    %v570 = vpack.c.b16 %v498, %v492
    %v571 = vpack.c.b16 %v499, %v493
    %v572 = vpack.c.b16 %v500, %v494
    %v573 = vpack.c.b16 %v501, %v495
    %v574 = vpack.c.b16 %v508, %v502
    %v575 = vpack.c.b16 %v509, %v503
    %v576 = vpack.c.b16 %v510, %v504
    %v577 = vpack.c.b16 %v511, %v505
    %v578 = vpack.c.b16 %v512, %v506
    %v579 = vpack.c.b16 %v513, %v507
    %v580 = vpack.c.b16 %v520, %v514
    %v581 = vpack.c.b16 %v521, %v515
    %v582 = vpack.c.b16 %v522, %v516
    %v583 = vpack.c.b16 %v523, %v517
    %v584 = vpack.c.b16 %v524, %v518
    %v585 = vpack.c.b16 %v525, %v519
    %v586 = vpack.c.b16 %v532, %v526
    %v587 = vpack.c.b16 %v533, %v527
    %v588 = vpack.c.b16 %v534, %v528
    %v589 = vpack.c.b16 %v535, %v529
    %v590 = vpack.c.b16 %v536, %v530
    %v591 = vpack.c.b16 %v537, %v531
    %v592 = vpack.c.b16 %v544, %v538
    %v593 = vpack.c.b16 %v545, %v539
    %v594 = vpack.c.b16 %v546, %v540
    %v595 = vpack.c.b16 %v547, %v541
    %v596 = vpack.c.b16 %v548, %v542
    %v597 = vpack.c.b16 %v549, %v543
    %646 = vmatprep.subr.bf16.mxu0 %v551
    %647 = vmatpush1.bf16.msra.mxu0 %v550
    %648 = vmatprep.subr.bf16.mxu0 %v557
    %649 = vmatpush1.bf16.msra.mxu0 %v556
    %650 = vmatprep.subr.bf16.mxu0 %v563
    %651 = vmatpush1.bf16.msra.mxu0 %v562
    %652 = vmatprep.subr.bf16.mxu0 %v569
    %653 = vmatpush1.bf16.msra.mxu0 %v568
    %654 = vmatprep.subr.bf16.mxu0 %v575
    %655 = vmatpush1.bf16.msra.mxu0 %v574
    %656 = vmatprep.subr.bf16.mxu0 %v581
    %657 = vmatpush1.bf16.msra.mxu0 %v580
    %658 = vmatprep.subr.bf16.mxu0 %v587
    %659 = vmatpush1.bf16.msra.mxu0 %v586
    %660 = vmatprep.subr.bf16.mxu0 %v593
    %661 = vmatpush1.bf16.msra.mxu0 %v592
    %662 = vmatprep.subr.bf16.mxu0 0
    %663 = vmatpush1.bf16.msra.mxu0 0
    %664 = vmatprep.subr.bf16.mxu0 0
    %665 = vmatpush1.bf16.msra.mxu0 0
    %666 = vmatprep.subr.bf16.mxu0 0
    %667 = vmatpush1.bf16.msra.mxu0 0
    %668 = vmatprep.subr.bf16.mxu0 0
    %669 = vmatpush1.bf16.msra.mxu0 0
    %670 = vmatprep.subr.bf16.mxu0 0
    %671 = vmatpush1.bf16.msra.mxu0 0
    %672 = vmatprep.subr.bf16.mxu0 0
    %673 = vmatpush1.bf16.msra.mxu0 0
    %674 = vmatprep.subr.bf16.mxu0 0
    %675 = vmatpush1.bf16.msra.mxu0 0
    %676 = vmatprep.subr.bf16.mxu0 0
    %677 = vmatpush1.bf16.msra.mxu0 0
    %678 = vmatprep.mubr.bf16.mxu0 0
    %679 = vmatmul.mubr.bf16.gmra.mrb[0].mxu0 %v400
    %v680 = vpop.f32.mrb[0].mxu0
    %v681 = vadd.f32 0.0, %v680
    %v682 = vpop.f32.mrb[0].mxu0
    %v683 = vadd.f32 0.0, %v682
    %v684 = vpop.f32.mrb[0].mxu0
    %v685 = vadd.f32 0.0, %v684
    %v686 = vpop.f32.mrb[0].mxu0
    %v687 = vadd.f32 0.0, %v686
    %688 = vmatprep.mubr.bf16.mxu0 0
    %689 = vmatmul.mubr.bf16.gmra.mrb[0].mxu0 %v401
    %v690 = vpop.f32.mrb[0].mxu0
    %v691 = vadd.f32 0.0, %v690
    %v692 = vpop.f32.mrb[0].mxu0
    %v693 = vadd.f32 0.0, %v692
    %v694 = vpop.f32.mrb[0].mxu0
    %v695 = vadd.f32 0.0, %v694
    %v696 = vpop.f32.mrb[0].mxu0
    %v697 = vadd.f32 0.0, %v696
    %698 = vmatprep.mubr.bf16.mxu0 0
    %699 = vmatmul.mubr.bf16.gmra.mrb[0].mxu0 %v402
    %v700 = vpop.f32.mrb[0].mxu0
    %v701 = vadd.f32 0.0, %v700
    %v702 = vpop.f32.mrb[0].mxu0
    %v703 = vadd.f32 0.0, %v702
    %v704 = vpop.f32.mrb[0].mxu0
    %v705 = vpop.f32.mrb[0].mxu0
    %706 = vdwg.mxu0
    %707 = vmatprep.subr.bf16.mxu0 %v553
    %708 = vmatpush1.bf16.msra.mxu0 %v552
    %709 = vmatprep.subr.bf16.mxu0 %v559
    %710 = vmatpush1.bf16.msra.mxu0 %v558
    %711 = vmatprep.subr.bf16.mxu0 %v565
    %712 = vmatpush1.bf16.msra.mxu0 %v564
    %713 = vmatprep.subr.bf16.mxu0 %v571
    %714 = vmatpush1.bf16.msra.mxu0 %v570
    %715 = vmatprep.subr.bf16.mxu0 %v577
    %716 = vmatpush1.bf16.msra.mxu0 %v576
    %717 = vmatprep.subr.bf16.mxu0 %v583
    %718 = vmatpush1.bf16.msra.mxu0 %v582
    %719 = vmatprep.subr.bf16.mxu0 %v589
    %720 = vmatpush1.bf16.msra.mxu0 %v588
    %721 = vmatprep.subr.bf16.mxu0 %v595
    %722 = vmatpush1.bf16.msra.mxu0 %v594
    %723 = vmatprep.subr.bf16.mxu0 0
    %724 = vmatpush1.bf16.msra.mxu0 0
    %725 = vmatprep.subr.bf16.mxu0 0
    %726 = vmatpush1.bf16.msra.mxu0 0
    %727 = vmatprep.subr.bf16.mxu0 0
    %728 = vmatpush1.bf16.msra.mxu0 0
    %729 = vmatprep.subr.bf16.mxu0 0
    %730 = vmatpush1.bf16.msra.mxu0 0
    %731 = vmatprep.subr.bf16.mxu0 0
    %732 = vmatpush1.bf16.msra.mxu0 0
    %733 = vmatprep.subr.bf16.mxu0 0
    %734 = vmatpush1.bf16.msra.mxu0 0
    %735 = vmatprep.subr.bf16.mxu0 0
    %736 = vmatpush1.bf16.msra.mxu0 0
    %737 = vmatprep.subr.bf16.mxu0 0
    %738 = vmatpush1.bf16.msra.mxu0 0
    %739 = vmatprep.mubr.bf16.mxu0 0
    %740 = vmatmul.mubr.bf16.gmra.mrb[0].mxu0 %v400
    %v741 = vpop.f32.mrb[0].mxu0
    %v742 = vadd.f32 0.0, %v741
    %v743 = vpop.f32.mrb[0].mxu0
    %v744 = vadd.f32 0.0, %v743
    %v745 = vpop.f32.mrb[0].mxu0
    %v746 = vadd.f32 0.0, %v745
    %v747 = vpop.f32.mrb[0].mxu0
    %v748 = vadd.f32 0.0, %v747
    %749 = vmatprep.mubr.bf16.mxu0 0
    %750 = vmatmul.mubr.bf16.gmra.mrb[0].mxu0 %v401
    %v751 = vpop.f32.mrb[0].mxu0
    %v752 = vadd.f32 0.0, %v751
    %v753 = vpop.f32.mrb[0].mxu0
    %v754 = vadd.f32 0.0, %v753
    %v755 = vpop.f32.mrb[0].mxu0
    %v756 = vadd.f32 0.0, %v755
    %v757 = vpop.f32.mrb[0].mxu0
    %v758 = vadd.f32 0.0, %v757
    %759 = vmatprep.mubr.bf16.mxu0 0
    %760 = vmatmul.mubr.bf16.gmra.mrb[0].mxu0 %v402
    %v761 = vpop.f32.mrb[0].mxu0
    %v762 = vadd.f32 0.0, %v761
    %v763 = vpop.f32.mrb[0].mxu0
    %v764 = vadd.f32 0.0, %v763
    %v765 = vpop.f32.mrb[0].mxu0
    %v766 = vpop.f32.mrb[0].mxu0
    %767 = vdwg.mxu0
    %768 = vmatprep.subr.bf16.mxu0 %v555
    %769 = vmatpush1.bf16.msra.mxu0 %v554
    %770 = vmatprep.subr.bf16.mxu0 %v561
    %771 = vmatpush1.bf16.msra.mxu0 %v560
    %772 = vmatprep.subr.bf16.mxu0 %v567
    %773 = vmatpush1.bf16.msra.mxu0 %v566
    %774 = vmatprep.subr.bf16.mxu0 %v573
    %775 = vmatpush1.bf16.msra.mxu0 %v572
    %776 = vmatprep.subr.bf16.mxu0 %v579
    %777 = vmatpush1.bf16.msra.mxu0 %v578
    %778 = vmatprep.subr.bf16.mxu0 %v585
    %779 = vmatpush1.bf16.msra.mxu0 %v584
    %780 = vmatprep.subr.bf16.mxu0 %v591
    %781 = vmatpush1.bf16.msra.mxu0 %v590
    %782 = vmatprep.subr.bf16.mxu0 %v597
    %783 = vmatpush1.bf16.msra.mxu0 %v596
    %784 = vmatprep.subr.bf16.mxu0 0
    %785 = vmatpush1.bf16.msra.mxu0 0
    %786 = vmatprep.subr.bf16.mxu0 0
    %787 = vmatpush1.bf16.msra.mxu0 0
    %788 = vmatprep.subr.bf16.mxu0 0
    %789 = vmatpush1.bf16.msra.mxu0 0
    %790 = vmatprep.subr.bf16.mxu0 0
    %791 = vmatpush1.bf16.msra.mxu0 0
    %792 = vmatprep.subr.bf16.mxu0 0
    %793 = vmatpush1.bf16.msra.mxu0 0
    %794 = vmatprep.subr.bf16.mxu0 0
    %795 = vmatpush1.bf16.msra.mxu0 0
    %796 = vmatprep.subr.bf16.mxu0 0
    %797 = vmatpush1.bf16.msra.mxu0 0
    %798 = vmatprep.subr.bf16.mxu0 0
    %799 = vmatpush1.bf16.msra.mxu0 0
    %800 = vmatprep.mubr.bf16.mxu0 0
    %801 = vmatmul.mubr.bf16.gmra.mrb[0].mxu0 %v400
    %v802 = vpop.f32.mrb[0].mxu0
    %v803 = vadd.f32 0.0, %v802
    %v804 = vpop.f32.mrb[0].mxu0
    %v805 = vadd.f32 0.0, %v804
    %v806 = vpop.f32.mrb[0].mxu0
    %v807 = vadd.f32 0.0, %v806
    %v808 = vpop.f32.mrb[0].mxu0
    %v809 = vadd.f32 0.0, %v808
    %810 = vmatprep.mubr.bf16.mxu0 0
    %811 = vmatmul.mubr.bf16.gmra.mrb[0].mxu0 %v401
    %v812 = vpop.f32.mrb[0].mxu0
    %v813 = vadd.f32 0.0, %v812
    %v814 = vpop.f32.mrb[0].mxu0
    %v815 = vadd.f32 0.0, %v814
    %v816 = vpop.f32.mrb[0].mxu0
    %v817 = vadd.f32 0.0, %v816
    %v818 = vpop.f32.mrb[0].mxu0
    %v819 = vadd.f32 0.0, %v818
    %820 = vmatprep.mubr.bf16.mxu0 0
    %821 = vmatmul.mubr.bf16.gmra.mrb[0].mxu0 %v402
    %v822 = vpop.f32.mrb[0].mxu0
    %v823 = vadd.f32 0.0, %v822
    %v824 = vpop.f32.mrb[0].mxu0
    %v825 = vadd.f32 0.0, %v824
    %v826 = vpop.f32.mrb[0].mxu0
    %v827 = vpop.f32.mrb[0].mxu0
    %828 = vdwg.mxu0
    %vm835 = vcmask 1046528
    %v836 = vrot.slane %v742, 1
    %v837 = vrot.slane %v746, 1
    %v838 = vsel %vm835, %v836, %v837
    %v839 = vrot.slane %v744, 1
    %v840 = vrot.slane %v748, 1
    %v841 = vsel %vm835, %v839, %v840
    %v842 = vrot.slane %v752, 1
    %v843 = vsel %vm835, %v837, %v842
    %v844 = vrot.slane %v754, 1
    %v845 = vsel %vm835, %v840, %v844
    %v852 = vadd.f32 %v681, %v838
    %v853 = vadd.f32 %v683, %v841
    %v854 = vadd.f32 %v685, %v843
    %v855 = vadd.f32 %v687, %v845
    %v856 = vadd.f32 %v691, %v842
    %v857 = vadd.f32 %v693, %v844
    %vm864 = vcmask 1045504
    %v865 = vrot.slane %v803, 2
    %v866 = vrot.slane %v807, 2
    %v867 = vsel %vm864, %v865, %v866
    %v868 = vrot.slane %v805, 2
    %v869 = vrot.slane %v809, 2
    %v870 = vsel %vm864, %v868, %v869
    %v871 = vrot.slane %v813, 2
    %v872 = vsel %vm864, %v866, %v871
    %v873 = vrot.slane %v815, 2
    %v874 = vsel %vm864, %v869, %v873
    %v881 = vadd.f32 %v852, %v867
    %v882 = vadd.f32 %v853, %v870
    %v883 = vadd.f32 %v854, %v872
    %v884 = vadd.f32 %v855, %v874
    %v885 = vadd.f32 %v856, %v871
    %v886 = vadd.f32 %v857, %v873
    %v891 = vrot.slane %v756, 1
    %v892 = vsel %vm835, %v842, %v891
    %v893 = vrot.slane %v758, 1
    %v894 = vsel %vm835, %v844, %v893
    %v895 = vrot.slane %v762, 1
    %v896 = vsel %vm835, %v891, %v895
    %v897 = vrot.slane %v764, 1
    %v898 = vsel %vm835, %v893, %v897
    %v905 = vadd.f32 %v691, %v892
    %v906 = vadd.f32 %v693, %v894
    %v907 = vadd.f32 %v695, %v896
    %v908 = vadd.f32 %v697, %v898
    %v909 = vadd.f32 %v701, %v895
    %v910 = vadd.f32 %v703, %v897
    %v915 = vrot.slane %v817, 2
    %v916 = vsel %vm864, %v871, %v915
    %v917 = vrot.slane %v819, 2
    %v918 = vsel %vm864, %v873, %v917
    %v919 = vrot.slane %v823, 2
    %v920 = vsel %vm864, %v915, %v919
    %v921 = vrot.slane %v825, 2
    %v922 = vsel %vm864, %v917, %v921
    %v929 = vadd.f32 %v905, %v916
    %v930 = vadd.f32 %v906, %v918
    %v931 = vadd.f32 %v907, %v920
    %v932 = vadd.f32 %v908, %v922
    %v933 = vadd.f32 %v909, %v919
    %v934 = vadd.f32 %v910, %v921
    %v941 = vrot.slane %v881, 1
    %v942 = vrot.slane %v883, 1
    %v943 = vsel %vm835, %v941, %v942
    %v944 = vrot.slane %v882, 1
    %v945 = vrot.slane %v884, 1
    %v946 = vsel %vm835, %v944, %v945
    %v947 = vrot.slane %v885, 1
    %v948 = vsel %vm835, %v942, %v947
    %v949 = vrot.slane %v886, 1
    %v950 = vsel %vm835, %v945, %v949
    %vm961 = vcmask 1042432
    %v962 = vrot.slane %v929, 5
    %v963 = vrot.slane %v931, 5
    %v964 = vsel %vm961, %v962, %v963
    %v965 = vrot.slane %v930, 5
    %v966 = vrot.slane %v932, 5
    %v967 = vsel %vm961, %v965, %v966
    %v968 = vrot.slane %v933, 5
    %v969 = vsel %vm961, %v963, %v968
    %v970 = vrot.slane %v934, 5
    %v971 = vsel %vm961, %v966, %v970
    %v976 = vld [vmem:[%s5] sm:$0x3]
    %v978 = vlaneseq
    %v979 = vshrl.u32 %v978, 7
    %v980 = vsub.s32 0, %v979
    %v981 = vrot.slane %v976, %v980
    %v982 = vlaneseq
    %v983 = vshrl.u32 %v982, 7
    %v984 = vsub.s32 1, %v983
    %v985 = vrot.slane %v976, %v984
    %v988 = vmul.f32 %v943, %v981
    %v989 = vmul.f32 %v946, %v985
    %v990 = vmul.f32 %v948, %v981
    %v991 = vmul.f32 %v950, %v985
    %v992 = vmul.f32 %v964, %v981
    %v993 = vmul.f32 %v967, %v985
    %v994 = vmul.f32 %v969, %v981
    %v995 = vmul.f32 %v971, %v985
    %v996 = vld [vmem:[%s6] sm:$0x3]
    %v998 = vlaneseq
    %v999 = vshrl.u32 %v998, 7
    %v1000 = vsub.s32 0, %v999
    %v1001 = vrot.slane %v996, %v1000
    %v1002 = vlaneseq
    %v1003 = vshrl.u32 %v1002, 7
    %v1004 = vsub.s32 1, %v1003
    %v1005 = vrot.slane %v996, %v1004
    %v1008 = vadd.f32 %v988, %v1001
    %v1009 = vadd.f32 %v989, %v1005
    %v1010 = vadd.f32 %v990, %v1001
    %v1011 = vadd.f32 %v991, %v1005
    %v1012 = vadd.f32 %v992, %v1001
    %v1013 = vadd.f32 %v993, %v1005
    %v1014 = vadd.f32 %v994, %v1001
    %v1015 = vadd.f32 %v995, %v1005
    %v1016 = vxor.u32 %v1008, 2147483648
    %v1017 = vxor.u32 %v1009, 2147483648
    %v1018 = vxor.u32 %v1010, 2147483648
    %v1019 = vxor.u32 %v1011, 2147483648
    %v1020 = vxor.u32 %v1012, 2147483648
    %v1021 = vxor.u32 %v1013, 2147483648
    %v1022 = vxor.u32 %v1014, 2147483648
    %v1023 = vxor.u32 %v1015, 2147483648
    %v1024 = vmul.f32 %v1016, 1.442695
    %v1025 = vpow.pop %v1024
    %v1026 = vmul.f32 %v1017, 1.442695
    %v1027 = vpow.pop %v1026
    %v1028 = vmul.f32 %v1018, 1.442695
    %v1029 = vpow.pop %v1028
    %v1030 = vmul.f32 %v1019, 1.442695
    %v1031 = vpow.pop %v1030
    %v1032 = vmul.f32 %v1020, 1.442695
    %v1033 = vpow.pop %v1032
    %v1034 = vmul.f32 %v1021, 1.442695
    %v1035 = vpow.pop %v1034
    %v1036 = vmul.f32 %v1022, 1.442695
    %v1037 = vpow.pop %v1036
    %v1038 = vmul.f32 %v1023, 1.442695
    %v1039 = vpow.pop %v1038
    %v1040 = vadd.f32 %v1025, 1.0
    %v1041 = vadd.f32 %v1027, 1.0
    %v1042 = vadd.f32 %v1029, 1.0
    %v1043 = vadd.f32 %v1031, 1.0
    %v1044 = vadd.f32 %v1033, 1.0
    %v1045 = vadd.f32 %v1035, 1.0
    %v1046 = vadd.f32 %v1037, 1.0
    %v1047 = vadd.f32 %v1039, 1.0
    %v1048 = vrcp.pop %v1040
    %v1049 = vmul.f32 1.0, %v1048
    %v1050 = vrcp.pop %v1041
    %v1051 = vmul.f32 1.0, %v1050
    %v1052 = vrcp.pop %v1042
    %v1053 = vmul.f32 1.0, %v1052
    %v1054 = vrcp.pop %v1043
    %v1055 = vmul.f32 1.0, %v1054
    %v1056 = vrcp.pop %v1044
    %v1057 = vmul.f32 1.0, %v1056
    %v1058 = vrcp.pop %v1045
    %v1059 = vmul.f32 1.0, %v1058
    %v1060 = vrcp.pop %v1046
    %v1061 = vmul.f32 1.0, %v1060
    %v1062 = vrcp.pop %v1047
    %v1063 = vmul.f32 1.0, %v1062
    %v1064 = vmul.f32 %v1008, %v1049
    %v1065 = vmul.f32 %v1009, %v1051
    %v1066 = vmul.f32 %v1010, %v1053
    %v1067 = vmul.f32 %v1011, %v1055
    %v1068 = vmul.f32 %v1012, %v1057
    %v1069 = vmul.f32 %v1013, %v1059
    %v1070 = vmul.f32 %v1014, %v1061
    %v1071 = vmul.f32 %v1015, %v1063
    %v1072 = vpack.c.bf16 %v1066, %v1064
    %v1073 = vpack.c.bf16 %v1067, %v1065
    %v1074 = vpack.c.bf16 %v1070, %v1068
    %v1075 = vpack.c.bf16 %v1071, %v1069
    %v1076 = vld [vmem:[#allocation9] sm:$0xf]
    %v1077 = vld [vmem:[#allocation9 + $0x4] sm:$0xf]
    %v1078 = vld [vmem:[#allocation9 + $0x8] sm:$0xf]
    %v1079 = vld [vmem:[#allocation9 + $0xc] sm:$0xf]
    %v1080 = vld [vmem:[#allocation9 + $0x10] sm:$0xf]
    %v1081 = vld [vmem:[#allocation9 + $0x14] sm:$0xf]
    %v1082 = vld [vmem:[#allocation9 + $0x18] sm:$0xf]
    %v1083 = vld [vmem:[#allocation9 + $0x1c] sm:$0xf]
    %v1084 = vld [vmem:[#allocation9 + $0x20] sm:$0xf]
    %v1085 = vld [vmem:[#allocation9 + $0x24] sm:$0xf]
    %v1086 = vld [vmem:[#allocation9 + $0x28] sm:$0xf]
    %v1087 = vld [vmem:[#allocation9 + $0x2c] sm:$0xf]
    %v1088 = vld [vmem:[#allocation9 + $0x30] sm:$0xf]
    %v1089 = vld [vmem:[#allocation9 + $0x34] sm:$0xf]
    %v1090 = vld [vmem:[#allocation9 + $0x38] sm:$0xf]
    %v1091 = vld [vmem:[#allocation9 + $0x3c] sm:$0xf]
    %v1092 = vld [vmem:[#allocation9 + $0x40] sm:$0xf]
    %v1093 = vld [vmem:[#allocation9 + $0x44] sm:$0xf]
    %v1094 = vld [vmem:[#allocation9 + $0x48] sm:$0xf]
    %v1095 = vld [vmem:[#allocation9 + $0x4c] sm:$0xf]
    %v1096 = vld [vmem:[#allocation9 + $0x50] sm:$0xf]
    %v1097 = vld [vmem:[#allocation9 + $0x54] sm:$0xf]
    %v1098 = vld [vmem:[#allocation9 + $0x58] sm:$0xf]
    %v1099 = vld [vmem:[#allocation9 + $0x5c] sm:$0xf]
    %v1100 = vld [vmem:[#allocation9 + $0x60] sm:$0xf]
    %v1101 = vld [vmem:[#allocation9 + $0x64] sm:$0xf]
    %v1102 = vld [vmem:[#allocation9 + $0x68] sm:$0xf]
    %v1103 = vld [vmem:[#allocation9 + $0x6c] sm:$0xf]
    %v1104 = vld [vmem:[#allocation9 + $0x70] sm:$0xf]
    %v1105 = vld [vmem:[#allocation9 + $0x74] sm:$0xf]
    %v1106 = vld [vmem:[#allocation9 + $0x78] sm:$0xf]
    %v1107 = vld [vmem:[#allocation9 + $0x7c] sm:$0xf]
    %v1140 = vunpack.c.l.b16 %v1076
    %v1141 = vunpack.c.l.b16 %v1077
    %v1142 = vunpack.c.l.b16 %v1078
    %v1143 = vunpack.c.l.b16 %v1079
    %v1144 = vunpack.c.l.b16 %v1080
    %v1145 = vunpack.c.l.b16 %v1081
    %v1146 = vunpack.c.l.b16 %v1082
    %v1147 = vunpack.c.l.b16 %v1083
    %v1148 = vunpack.c.l.b16 %v1084
    %v1149 = vunpack.c.l.b16 %v1085
    %v1150 = vunpack.c.l.b16 %v1086
    %v1151 = vunpack.c.l.b16 %v1087
    %v1152 = vunpack.c.l.b16 %v1088
    %v1153 = vunpack.c.l.b16 %v1089
    %v1154 = vunpack.c.l.b16 %v1090
    %v1155 = vunpack.c.l.b16 %v1091
    %v1156 = vunpack.c.l.b16 %v1092
    %v1157 = vunpack.c.l.b16 %v1093
    %v1158 = vunpack.c.l.b16 %v1094
    %v1159 = vunpack.c.l.b16 %v1095
    %v1160 = vunpack.c.l.b16 %v1096
    %v1161 = vunpack.c.l.b16 %v1097
    %v1162 = vunpack.c.l.b16 %v1098
    %v1163 = vunpack.c.l.b16 %v1099
    %v1164 = vunpack.c.l.b16 %v1100
    %v1165 = vunpack.c.l.b16 %v1101
    %v1166 = vunpack.c.l.b16 %v1102
    %v1167 = vunpack.c.l.b16 %v1103
    %v1168 = vunpack.c.l.b16 %v1104
    %v1169 = vunpack.c.l.b16 %v1105
    %v1170 = vunpack.c.l.b16 %v1106
    %v1171 = vunpack.c.l.b16 %v1107
    %v1172 = vpack.c.b16 %v1141, %v1140
    %v1173 = vpack.c.b16 %v1143, %v1142
    %v1174 = vpack.c.b16 %v1145, %v1144
    %v1175 = vpack.c.b16 %v1147, %v1146
    %v1176 = vpack.c.b16 %v1149, %v1148
    %v1177 = vpack.c.b16 %v1151, %v1150
    %v1178 = vpack.c.b16 %v1153, %v1152
    %v1179 = vpack.c.b16 %v1155, %v1154
    %v1180 = vpack.c.b16 %v1157, %v1156
    %v1181 = vpack.c.b16 %v1159, %v1158
    %v1182 = vpack.c.b16 %v1161, %v1160
    %v1183 = vpack.c.b16 %v1163, %v1162
    %v1184 = vpack.c.b16 %v1165, %v1164
    %v1185 = vpack.c.b16 %v1167, %v1166
    %v1186 = vpack.c.b16 %v1169, %v1168
    %v1187 = vpack.c.b16 %v1171, %v1170
    %1204 = vmatprep.subr.bf16.mxu0 0
    %1205 = vmatpush1.bf16.msra.mxu0 %v1172
    %1206 = vmatprep.subr.bf16.mxu0 0
    %1207 = vmatpush1.bf16.msra.mxu0 %v1173
    %1208 = vmatprep.subr.bf16.mxu0 0
    %1209 = vmatpush1.bf16.msra.mxu0 %v1174
    %1210 = vmatprep.subr.bf16.mxu0 0
    %1211 = vmatpush1.bf16.msra.mxu0 %v1175
    %1212 = vmatprep.subr.bf16.mxu0 0
    %1213 = vmatpush1.bf16.msra.mxu0 %v1176
    %1214 = vmatprep.subr.bf16.mxu0 0
    %1215 = vmatpush1.bf16.msra.mxu0 %v1177
    %1216 = vmatprep.subr.bf16.mxu0 0
    %1217 = vmatpush1.bf16.msra.mxu0 %v1178
    %1218 = vmatprep.subr.bf16.mxu0 0
    %1219 = vmatpush1.bf16.msra.mxu0 %v1179
    %1220 = vmatprep.subr.bf16.mxu0 0
    %1221 = vmatpush1.bf16.msra.mxu0 %v1180
    %1222 = vmatprep.subr.bf16.mxu0 0
    %1223 = vmatpush1.bf16.msra.mxu0 %v1181
    %1224 = vmatprep.subr.bf16.mxu0 0
    %1225 = vmatpush1.bf16.msra.mxu0 %v1182
    %1226 = vmatprep.subr.bf16.mxu0 0
    %1227 = vmatpush1.bf16.msra.mxu0 %v1183
    %1228 = vmatprep.subr.bf16.mxu0 0
    %1229 = vmatpush1.bf16.msra.mxu0 %v1184
    %1230 = vmatprep.subr.bf16.mxu0 0
    %1231 = vmatpush1.bf16.msra.mxu0 %v1185
    %1232 = vmatprep.subr.bf16.mxu0 0
    %1233 = vmatpush1.bf16.msra.mxu0 %v1186
    %1234 = vmatprep.subr.bf16.mxu0 0
    %1235 = vmatpush1.bf16.msra.mxu0 %v1187
    %1236 = vmatprep.mubr.bf16.mxu0 %v1073
    %1237 = vmatmul.mubr.bf16.gmra.mrb[0].mxu0 %v1072
    %v1238 = vpop.f32.mrb[0].mxu0
    %v1239 = vadd.f32 0.0, %v1238
    %v1240 = vpop.f32.mrb[0].mxu0
    %v1241 = vpop.f32.mrb[0].mxu0
    %v1242 = vadd.f32 0.0, %v1241
    %v1243 = vpop.f32.mrb[0].mxu0
    %1244 = vmatprep.mubr.bf16.mxu0 %v1075
    %1245 = vmatmul.mubr.bf16.gmra.mrb[0].mxu0 %v1074
    %v1246 = vpop.f32.mrb[0].mxu0
    %v1247 = vadd.f32 0.0, %v1246
    %v1248 = vpop.f32.mrb[0].mxu0
    %v1249 = vpop.f32.mrb[0].mxu0
    %v1250 = vadd.f32 0.0, %v1249
    %v1251 = vpop.f32.mrb[0].mxu0
    %1252 = vdwg.mxu0
    %v1253 = vld [vmem:[%s8] sm:$0x1]
    %v1255 = vlaneseq
    %v1256 = vshrl.u32 %v1255, 7
    %v1257 = vsub.s32 0, %v1256
    %v1258 = vrot.slane %v1253, %v1257
    %v1260 = vmul.f32 %v1239, %v1258
    %v1261 = vmul.f32 %v1242, %v1258
    %v1262 = vmul.f32 %v1247, %v1258
    %v1263 = vmul.f32 %v1250, %v1258
    %v1264 = vld [vmem:[%s9] sm:$0x1]
    %v1266 = vlaneseq
    %v1267 = vshrl.u32 %v1266, 7
    %v1268 = vsub.s32 0, %v1267
    %v1269 = vrot.slane %v1264, %v1268
    %v1271 = vadd.f32 %v1260, %v1269
    %v1272 = vadd.f32 %v1261, %v1269
    %v1273 = vadd.f32 %v1262, %v1269
    %v1274 = vadd.f32 %v1263, %v1269
    %v1275 = vxor.u32 %v1271, 2147483648
    %v1276 = vxor.u32 %v1272, 2147483648
    %v1277 = vxor.u32 %v1273, 2147483648
    %v1278 = vxor.u32 %v1274, 2147483648
    %v1279 = vmul.f32 %v1275, 1.442695
    %v1280 = vpow.pop %v1279
    %v1281 = vmul.f32 %v1276, 1.442695
    %v1282 = vpow.pop %v1281
    %v1283 = vmul.f32 %v1277, 1.442695
    %v1284 = vpow.pop %v1283
    %v1285 = vmul.f32 %v1278, 1.442695
    %v1286 = vpow.pop %v1285
    %v1287 = vadd.f32 %v1280, 1.0
    %v1288 = vadd.f32 %v1282, 1.0
    %v1289 = vadd.f32 %v1284, 1.0
    %v1290 = vadd.f32 %v1286, 1.0
    %v1291 = vrcp.pop %v1287
    %v1292 = vmul.f32 1.0, %v1291
    %v1293 = vrcp.pop %v1288
    %v1294 = vmul.f32 1.0, %v1293
    %v1295 = vrcp.pop %v1289
    %v1296 = vmul.f32 1.0, %v1295
    %v1297 = vrcp.pop %v1290
    %v1298 = vmul.f32 1.0, %v1297
    %v1299 = vmul.f32 %v1271, %v1292
    %v1300 = vmul.f32 %v1272, %v1294
    %v1301 = vmul.f32 %v1273, %v1296
    %v1302 = vmul.f32 %v1274, %v1298
    %v1303 = vpack.c.bf16 %v1300, %v1299
    %v1304 = vpack.c.bf16 %v1302, %v1301
    %v1306 = vunpack.c.l.b16 %v1303
    %v1307 = vunpack.c.h.b16 %v1303
    %v1308 = vpack.c.b16 %v1306, %v1306
    %v1309 = vpack.c.b16 %v1307, %v1307
    %v1310 = vrot.slane %v1308, 7
    %v1311 = vrot.slane %v1310, 4
    %v1312 = vrot.slane %v1309, 7
    %v1313 = vsel %vm306, %v1311, %v1312
    %v1314 = vrot.slane %v1312, 4
    %1318 = vst [vmem:[#allocation2] sm:$0xe] %v1310
    %1319 = vst [vmem:[#allocation2 + $0x4] sm:$0xf] %v1313
    %1320 = vst [vmem:[#allocation2 + $0x8] sm:$0x1] %v1314
    %v1322 = vunpack.c.l.b16 %v1304
    %v1323 = vunpack.c.h.b16 %v1304
    %v1324 = vpack.c.b16 %v1322, %v1322
    %v1325 = vpack.c.b16 %v1323, %v1323
    %v1326 = vrot.slane %v1324, 5
    %v1327 = vrot.slane %v1326, 4
    %v1328 = vrot.slane %v1325, 5
    %v1329 = vsel %vm325, %v1327, %v1328
    %v1330 = vrot.slane %v1328, 4
    %1334 = vst [vmem:[#allocation2 + $0x8] sm:$0x8] %v1326
    %1335 = vst [vmem:[#allocation2 + $0xc] sm:$0xf] %v1329
    %1336 = vst [vmem:[#allocation2 + $0x10] sm:$0x7] %v1330
    %v1337 = vld [vmem:[#allocation2] sm:$0xf]
    %v1338 = vld [vmem:[#allocation2 + $0x4] sm:$0xf]
    %v1339 = vld [vmem:[#allocation2 + $0x8] sm:$0xf]
    %v1340 = vld [vmem:[#allocation2 + $0xc] sm:$0xf]
    %v1341 = vld [vmem:[#allocation2 + $0x10] sm:$0xf]
    %v1342 = vld [vmem:[#allocation11] sm:$0xff]
    %v1343 = vld [vmem:[#allocation11 + $0x8] sm:$0xff]
    %v1344 = vld [vmem:[#allocation11 + $0x10] sm:$0xff]
    %v1345 = vld [vmem:[#allocation11 + $0x18] sm:$0xff]
    %v1346 = vld [vmem:[#allocation11 + $0x20] sm:$0xff]
    %v1347 = vld [vmem:[#allocation11 + $0x28] sm:$0xff]
    %v1348 = vld [vmem:[#allocation11 + $0x30] sm:$0xff]
    %v1349 = vld [vmem:[#allocation11 + $0x38] sm:$0xff]
    %v1350 = vld [vmem:[#allocation11 + $0x40] sm:$0xff]
    %v1351 = vld [vmem:[#allocation11 + $0x48] sm:$0xff]
    %v1352 = vld [vmem:[#allocation11 + $0x50] sm:$0xff]
    %v1353 = vld [vmem:[#allocation11 + $0x58] sm:$0xff]
    %v1354 = vld [vmem:[#allocation11 + $0x60] sm:$0xff]
    %v1355 = vld [vmem:[#allocation11 + $0x68] sm:$0xff]
    %v1356 = vld [vmem:[#allocation11 + $0x70] sm:$0xff]
    %v1357 = vld [vmem:[#allocation11 + $0x78] sm:$0xff]
    %v1358 = vld [vmem:[#allocation11 + $0x80] sm:$0xff]
    %v1359 = vld [vmem:[#allocation11 + $0x88] sm:$0xff]
    %v1360 = vld [vmem:[#allocation11 + $0x90] sm:$0xff]
    %v1361 = vld [vmem:[#allocation11 + $0x98] sm:$0xff]
    %v1362 = vld [vmem:[#allocation11 + $0xa0] sm:$0xff]
    %v1363 = vld [vmem:[#allocation11 + $0xa8] sm:$0xff]
    %v1364 = vld [vmem:[#allocation11 + $0xb0] sm:$0xff]
    %v1365 = vld [vmem:[#allocation11 + $0xb8] sm:$0xff]
    %v1366 = vld [vmem:[#allocation11 + $0xc0] sm:$0xff]
    %v1367 = vld [vmem:[#allocation11 + $0xc8] sm:$0xff]
    %v1368 = vld [vmem:[#allocation11 + $0xd0] sm:$0xff]
    %v1369 = vld [vmem:[#allocation11 + $0xd8] sm:$0xff]
    %v1370 = vld [vmem:[#allocation11 + $0xe0] sm:$0xff]
    %v1371 = vld [vmem:[#allocation11 + $0xe8] sm:$0xff]
    %v1372 = vld [vmem:[#allocation11 + $0xf0] sm:$0xff]
    %v1373 = vld [vmem:[#allocation11 + $0xf8] sm:$0xff]
    %v1374 = vld [vmem:[#allocation11 + $0x100] sm:$0xff]
    %v1375 = vld [vmem:[#allocation11 + $0x108] sm:$0xff]
    %v1376 = vld [vmem:[#allocation11 + $0x110] sm:$0xff]
    %v1377 = vld [vmem:[#allocation11 + $0x118] sm:$0xff]
    %v1378 = vld [vmem:[#allocation11 + $0x120] sm:$0xff]
    %v1379 = vld [vmem:[#allocation11 + $0x128] sm:$0xff]
    %v1380 = vld [vmem:[#allocation11 + $0x130] sm:$0xff]
    %v1381 = vld [vmem:[#allocation11 + $0x138] sm:$0xff]
    %v1382 = vld [vmem:[#allocation11 + $0x140] sm:$0xff]
    %v1383 = vld [vmem:[#allocation11 + $0x148] sm:$0xff]
    %v1384 = vld [vmem:[#allocation11 + $0x150] sm:$0xff]
    %v1385 = vld [vmem:[#allocation11 + $0x158] sm:$0xff]
    %v1386 = vld [vmem:[#allocation11 + $0x160] sm:$0xff]
    %v1387 = vld [vmem:[#allocation11 + $0x168] sm:$0xff]
    %v1388 = vld [vmem:[#allocation11 + $0x170] sm:$0xff]
    %v1389 = vld [vmem:[#allocation11 + $0x178] sm:$0xff]
    %v1395 = vunpack.c.l.b16 %v1337
    %v1396 = vunpack.c.l.b16 %v1338
    %v1397 = vunpack.c.l.b16 %v1339
    %v1398 = vunpack.c.l.b16 %v1340
    %v1399 = vunpack.c.l.b16 %v1341
    %v1400 = vpack.c.b16 %v1396, %v1395
    %v1401 = vpack.c.b16 %v1398, %v1397
    %v1402 = vpack.c.b16 %v1399, %v1399
    %v1454 = vunpack.c.l.b16 %v1342
    %v1455 = vunpack.c.h.b16 %v1342
    %v1456 = vunpack.c.l.b16 %v1343
    %v1457 = vunpack.c.h.b16 %v1343
    %v1458 = vunpack.c.l.b16 %v1344
    %v1459 = vunpack.c.h.b16 %v1344
    %v1460 = vunpack.c.l.b16 %v1345
    %v1461 = vunpack.c.h.b16 %v1345
    %v1462 = vunpack.c.l.b16 %v1346
    %v1463 = vunpack.c.h.b16 %v1346
    %v1464 = vunpack.c.l.b16 %v1347
    %v1465 = vunpack.c.h.b16 %v1347
    %v1466 = vunpack.c.l.b16 %v1348
    %v1467 = vunpack.c.h.b16 %v1348
    %v1468 = vunpack.c.l.b16 %v1349
    %v1469 = vunpack.c.h.b16 %v1349
    %v1470 = vunpack.c.l.b16 %v1350
    %v1471 = vunpack.c.h.b16 %v1350
    %v1472 = vunpack.c.l.b16 %v1351
    %v1473 = vunpack.c.h.b16 %v1351
    %v1474 = vunpack.c.l.b16 %v1352
    %v1475 = vunpack.c.h.b16 %v1352
    %v1476 = vunpack.c.l.b16 %v1353
    %v1477 = vunpack.c.h.b16 %v1353
    %v1478 = vunpack.c.l.b16 %v1354
    %v1479 = vunpack.c.h.b16 %v1354
    %v1480 = vunpack.c.l.b16 %v1355
    %v1481 = vunpack.c.h.b16 %v1355
    %v1482 = vunpack.c.l.b16 %v1356
    %v1483 = vunpack.c.h.b16 %v1356
    %v1484 = vunpack.c.l.b16 %v1357
    %v1485 = vunpack.c.h.b16 %v1357
    %v1486 = vunpack.c.l.b16 %v1358
    %v1487 = vunpack.c.h.b16 %v1358
    %v1488 = vunpack.c.l.b16 %v1359
    %v1489 = vunpack.c.h.b16 %v1359
    %v1490 = vunpack.c.l.b16 %v1360
    %v1491 = vunpack.c.h.b16 %v1360
    %v1492 = vunpack.c.l.b16 %v1361
    %v1493 = vunpack.c.h.b16 %v1361
    %v1494 = vunpack.c.l.b16 %v1362
    %v1495 = vunpack.c.h.b16 %v1362
    %v1496 = vunpack.c.l.b16 %v1363
    %v1497 = vunpack.c.h.b16 %v1363
    %v1498 = vunpack.c.l.b16 %v1364
    %v1499 = vunpack.c.h.b16 %v1364
    %v1500 = vunpack.c.l.b16 %v1365
    %v1501 = vunpack.c.h.b16 %v1365
    %v1502 = vunpack.c.l.b16 %v1366
    %v1503 = vunpack.c.h.b16 %v1366
    %v1504 = vunpack.c.l.b16 %v1367
    %v1505 = vunpack.c.h.b16 %v1367
    %v1506 = vunpack.c.l.b16 %v1368
    %v1507 = vunpack.c.h.b16 %v1368
    %v1508 = vunpack.c.l.b16 %v1369
    %v1509 = vunpack.c.h.b16 %v1369
    %v1510 = vunpack.c.l.b16 %v1370
    %v1511 = vunpack.c.h.b16 %v1370
    %v1512 = vunpack.c.l.b16 %v1371
    %v1513 = vunpack.c.h.b16 %v1371
    %v1514 = vunpack.c.l.b16 %v1372
    %v1515 = vunpack.c.h.b16 %v1372
    %v1516 = vunpack.c.l.b16 %v1373
    %v1517 = vunpack.c.h.b16 %v1373
    %v1518 = vunpack.c.l.b16 %v1374
    %v1519 = vunpack.c.h.b16 %v1374
    %v1520 = vunpack.c.l.b16 %v1375
    %v1521 = vunpack.c.h.b16 %v1375
    %v1522 = vunpack.c.l.b16 %v1376
    %v1523 = vunpack.c.h.b16 %v1376
    %v1524 = vunpack.c.l.b16 %v1377
    %v1525 = vunpack.c.h.b16 %v1377
    %v1526 = vunpack.c.l.b16 %v1378
    %v1527 = vunpack.c.h.b16 %v1378
    %v1528 = vunpack.c.l.b16 %v1379
    %v1529 = vunpack.c.h.b16 %v1379
    %v1530 = vunpack.c.l.b16 %v1380
    %v1531 = vunpack.c.h.b16 %v1380
    %v1532 = vunpack.c.l.b16 %v1381
    %v1533 = vunpack.c.h.b16 %v1381
    %v1534 = vunpack.c.l.b16 %v1382
    %v1535 = vunpack.c.h.b16 %v1382
    %v1536 = vunpack.c.l.b16 %v1383
    %v1537 = vunpack.c.h.b16 %v1383
    %v1538 = vunpack.c.l.b16 %v1384
    %v1539 = vunpack.c.h.b16 %v1384
    %v1540 = vunpack.c.l.b16 %v1385
    %v1541 = vunpack.c.h.b16 %v1385
    %v1542 = vunpack.c.l.b16 %v1386
    %v1543 = vunpack.c.h.b16 %v1386
    %v1544 = vunpack.c.l.b16 %v1387
    %v1545 = vunpack.c.h.b16 %v1387
    %v1546 = vunpack.c.l.b16 %v1388
    %v1547 = vunpack.c.h.b16 %v1388
    %v1548 = vunpack.c.l.b16 %v1389
    %v1549 = vunpack.c.h.b16 %v1389
    %v1550 = vpack.c.b16 %v1460, %v1454
    %v1551 = vpack.c.b16 %v1461, %v1455
    %v1552 = vpack.c.b16 %v1462, %v1456
    %v1553 = vpack.c.b16 %v1463, %v1457
    %v1554 = vpack.c.b16 %v1464, %v1458
    %v1555 = vpack.c.b16 %v1465, %v1459
    %v1556 = vpack.c.b16 %v1472, %v1466
    %v1557 = vpack.c.b16 %v1473, %v1467
    %v1558 = vpack.c.b16 %v1474, %v1468
    %v1559 = vpack.c.b16 %v1475, %v1469
    %v1560 = vpack.c.b16 %v1476, %v1470
    %v1561 = vpack.c.b16 %v1477, %v1471
    %v1562 = vpack.c.b16 %v1484, %v1478
    %v1563 = vpack.c.b16 %v1485, %v1479
    %v1564 = vpack.c.b16 %v1486, %v1480
    %v1565 = vpack.c.b16 %v1487, %v1481
    %v1566 = vpack.c.b16 %v1488, %v1482
    %v1567 = vpack.c.b16 %v1489, %v1483
    %v1568 = vpack.c.b16 %v1496, %v1490
    %v1569 = vpack.c.b16 %v1497, %v1491
    %v1570 = vpack.c.b16 %v1498, %v1492
    %v1571 = vpack.c.b16 %v1499, %v1493
    %v1572 = vpack.c.b16 %v1500, %v1494
    %v1573 = vpack.c.b16 %v1501, %v1495
    %v1574 = vpack.c.b16 %v1508, %v1502
    %v1575 = vpack.c.b16 %v1509, %v1503
    %v1576 = vpack.c.b16 %v1510, %v1504
    %v1577 = vpack.c.b16 %v1511, %v1505
    %v1578 = vpack.c.b16 %v1512, %v1506
    %v1579 = vpack.c.b16 %v1513, %v1507
    %v1580 = vpack.c.b16 %v1520, %v1514
    %v1581 = vpack.c.b16 %v1521, %v1515
    %v1582 = vpack.c.b16 %v1522, %v1516
    %v1583 = vpack.c.b16 %v1523, %v1517
    %v1584 = vpack.c.b16 %v1524, %v1518
    %v1585 = vpack.c.b16 %v1525, %v1519
    %v1586 = vpack.c.b16 %v1532, %v1526
    %v1587 = vpack.c.b16 %v1533, %v1527
    %v1588 = vpack.c.b16 %v1534, %v1528
    %v1589 = vpack.c.b16 %v1535, %v1529
    %v1590 = vpack.c.b16 %v1536, %v1530
    %v1591 = vpack.c.b16 %v1537, %v1531
    %v1592 = vpack.c.b16 %v1544, %v1538
    %v1593 = vpack.c.b16 %v1545, %v1539
    %v1594 = vpack.c.b16 %v1546, %v1540
    %v1595 = vpack.c.b16 %v1547, %v1541
    %v1596 = vpack.c.b16 %v1548, %v1542
    %v1597 = vpack.c.b16 %v1549, %v1543
    %1646 = vmatprep.subr.bf16.mxu0 %v1551
    %1647 = vmatpush1.bf16.msra.mxu0 %v1550
    %1648 = vmatprep.subr.bf16.mxu0 %v1557
    %1649 = vmatpush1.bf16.msra.mxu0 %v1556
    %1650 = vmatprep.subr.bf16.mxu0 %v1563
    %1651 = vmatpush1.bf16.msra.mxu0 %v1562
    %1652 = vmatprep.subr.bf16.mxu0 %v1569
    %1653 = vmatpush1.bf16.msra.mxu0 %v1568
    %1654 = vmatprep.subr.bf16.mxu0 %v1575
    %1655 = vmatpush1.bf16.msra.mxu0 %v1574
    %1656 = vmatprep.subr.bf16.mxu0 %v1581
    %1657 = vmatpush1.bf16.msra.mxu0 %v1580
    %1658 = vmatprep.subr.bf16.mxu0 %v1587
    %1659 = vmatpush1.bf16.msra.mxu0 %v1586
    %1660 = vmatprep.subr.bf16.mxu0 %v1593
    %1661 = vmatpush1.bf16.msra.mxu0 %v1592
    %1662 = vmatprep.subr.bf16.mxu0 0
    %1663 = vmatpush1.bf16.msra.mxu0 0
    %1664 = vmatprep.subr.bf16.mxu0 0
    %1665 = vmatpush1.bf16.msra.mxu0 0
    %1666 = vmatprep.subr.bf16.mxu0 0
    %1667 = vmatpush1.bf16.msra.mxu0 0
    %1668 = vmatprep.subr.bf16.mxu0 0
    %1669 = vmatpush1.bf16.msra.mxu0 0
    %1670 = vmatprep.subr.bf16.mxu0 0
    %1671 = vmatpush1.bf16.msra.mxu0 0
    %1672 = vmatprep.subr.bf16.mxu0 0
    %1673 = vmatpush1.bf16.msra.mxu0 0
    %1674 = vmatprep.subr.bf16.mxu0 0
    %1675 = vmatpush1.bf16.msra.mxu0 0
    %1676 = vmatprep.subr.bf16.mxu0 0
    %1677 = vmatpush1.bf16.msra.mxu0 0
    %1678 = vmatprep.mubr.bf16.mxu0 0
    %1679 = vmatmul.mubr.bf16.gmra.mrb[0].mxu0 %v1400
    %v1680 = vpop.f32.mrb[0].mxu0
    %v1681 = vadd.f32 0.0, %v1680
    %v1682 = vpop.f32.mrb[0].mxu0
    %v1683 = vadd.f32 0.0, %v1682
    %v1684 = vpop.f32.mrb[0].mxu0
    %v1685 = vadd.f32 0.0, %v1684
    %v1686 = vpop.f32.mrb[0].mxu0
    %v1687 = vadd.f32 0.0, %v1686
    %1688 = vmatprep.mubr.bf16.mxu0 0
    %1689 = vmatmul.mubr.bf16.gmra.mrb[0].mxu0 %v1401
    %v1690 = vpop.f32.mrb[0].mxu0
    %v1691 = vadd.f32 0.0, %v1690
    %v1692 = vpop.f32.mrb[0].mxu0
    %v1693 = vadd.f32 0.0, %v1692
    %v1694 = vpop.f32.mrb[0].mxu0
    %v1695 = vadd.f32 0.0, %v1694
    %v1696 = vpop.f32.mrb[0].mxu0
    %v1697 = vadd.f32 0.0, %v1696
    %1698 = vmatprep.mubr.bf16.mxu0 0
    %1699 = vmatmul.mubr.bf16.gmra.mrb[0].mxu0 %v1402
    %v1700 = vpop.f32.mrb[0].mxu0
    %v1701 = vadd.f32 0.0, %v1700
    %v1702 = vpop.f32.mrb[0].mxu0
    %v1703 = vadd.f32 0.0, %v1702
    %v1704 = vpop.f32.mrb[0].mxu0
    %v1705 = vpop.f32.mrb[0].mxu0
    %1706 = vdwg.mxu0
    %1707 = vmatprep.subr.bf16.mxu0 %v1553
    %1708 = vmatpush1.bf16.msra.mxu0 %v1552
    %1709 = vmatprep.subr.bf16.mxu0 %v1559
    %1710 = vmatpush1.bf16.msra.mxu0 %v1558
    %1711 = vmatprep.subr.bf16.mxu0 %v1565
    %1712 = vmatpush1.bf16.msra.mxu0 %v1564
    %1713 = vmatprep.subr.bf16.mxu0 %v1571
    %1714 = vmatpush1.bf16.msra.mxu0 %v1570
    %1715 = vmatprep.subr.bf16.mxu0 %v1577
    %1716 = vmatpush1.bf16.msra.mxu0 %v1576
    %1717 = vmatprep.subr.bf16.mxu0 %v1583
    %1718 = vmatpush1.bf16.msra.mxu0 %v1582
    %1719 = vmatprep.subr.bf16.mxu0 %v1589
    %1720 = vmatpush1.bf16.msra.mxu0 %v1588
    %1721 = vmatprep.subr.bf16.mxu0 %v1595
    %1722 = vmatpush1.bf16.msra.mxu0 %v1594
    %1723 = vmatprep.subr.bf16.mxu0 0
    %1724 = vmatpush1.bf16.msra.mxu0 0
    %1725 = vmatprep.subr.bf16.mxu0 0
    %1726 = vmatpush1.bf16.msra.mxu0 0
    %1727 = vmatprep.subr.bf16.mxu0 0
    %1728 = vmatpush1.bf16.msra.mxu0 0
    %1729 = vmatprep.subr.bf16.mxu0 0
    %1730 = vmatpush1.bf16.msra.mxu0 0
    %1731 = vmatprep.subr.bf16.mxu0 0
    %1732 = vmatpush1.bf16.msra.mxu0 0
    %1733 = vmatprep.subr.bf16.mxu0 0
    %1734 = vmatpush1.bf16.msra.mxu0 0
    %1735 = vmatprep.subr.bf16.mxu0 0
    %1736 = vmatpush1.bf16.msra.mxu0 0
    %1737 = vmatprep.subr.bf16.mxu0 0
    %1738 = vmatpush1.bf16.msra.mxu0 0
    %1739 = vmatprep.mubr.bf16.mxu0 0
    %1740 = vmatmul.mubr.bf16.gmra.mrb[0].mxu0 %v1400
    %v1741 = vpop.f32.mrb[0].mxu0
    %v1742 = vadd.f32 0.0, %v1741
    %v1743 = vpop.f32.mrb[0].mxu0
    %v1744 = vadd.f32 0.0, %v1743
    %v1745 = vpop.f32.mrb[0].mxu0
    %v1746 = vadd.f32 0.0, %v1745
    %v1747 = vpop.f32.mrb[0].mxu0
    %v1748 = vadd.f32 0.0, %v1747
    %1749 = vmatprep.mubr.bf16.mxu0 0
    %1750 = vmatmul.mubr.bf16.gmra.mrb[0].mxu0 %v1401
    %v1751 = vpop.f32.mrb[0].mxu0
    %v1752 = vadd.f32 0.0, %v1751
    %v1753 = vpop.f32.mrb[0].mxu0
    %v1754 = vadd.f32 0.0, %v1753
    %v1755 = vpop.f32.mrb[0].mxu0
    %v1756 = vadd.f32 0.0, %v1755
    %v1757 = vpop.f32.mrb[0].mxu0
    %v1758 = vadd.f32 0.0, %v1757
    %1759 = vmatprep.mubr.bf16.mxu0 0
    %1760 = vmatmul.mubr.bf16.gmra.mrb[0].mxu0 %v1402
    %v1761 = vpop.f32.mrb[0].mxu0
    %v1762 = vadd.f32 0.0, %v1761
    %v1763 = vpop.f32.mrb[0].mxu0
    %v1764 = vadd.f32 0.0, %v1763
    %v1765 = vpop.f32.mrb[0].mxu0
    %v1766 = vpop.f32.mrb[0].mxu0
    %1767 = vdwg.mxu0
    %1768 = vmatprep.subr.bf16.mxu0 %v1555
    %1769 = vmatpush1.bf16.msra.mxu0 %v1554
    %1770 = vmatprep.subr.bf16.mxu0 %v1561
    %1771 = vmatpush1.bf16.msra.mxu0 %v1560
    %1772 = vmatprep.subr.bf16.mxu0 %v1567
    %1773 = vmatpush1.bf16.msra.mxu0 %v1566
    %1774 = vmatprep.subr.bf16.mxu0 %v1573
    %1775 = vmatpush1.bf16.msra.mxu0 %v1572
    %1776 = vmatprep.subr.bf16.mxu0 %v1579
    %1777 = vmatpush1.bf16.msra.mxu0 %v1578
    %1778 = vmatprep.subr.bf16.mxu0 %v1585
    %1779 = vmatpush1.bf16.msra.mxu0 %v1584
    %1780 = vmatprep.subr.bf16.mxu0 %v1591
    %1781 = vmatpush1.bf16.msra.mxu0 %v1590
    %1782 = vmatprep.subr.bf16.mxu0 %v1597
    %1783 = vmatpush1.bf16.msra.mxu0 %v1596
    %1784 = vmatprep.subr.bf16.mxu0 0
    %1785 = vmatpush1.bf16.msra.mxu0 0
    %1786 = vmatprep.subr.bf16.mxu0 0
    %1787 = vmatpush1.bf16.msra.mxu0 0
    %1788 = vmatprep.subr.bf16.mxu0 0
    %1789 = vmatpush1.bf16.msra.mxu0 0
    %1790 = vmatprep.subr.bf16.mxu0 0
    %1791 = vmatpush1.bf16.msra.mxu0 0
    %1792 = vmatprep.subr.bf16.mxu0 0
    %1793 = vmatpush1.bf16.msra.mxu0 0
    %1794 = vmatprep.subr.bf16.mxu0 0
    %1795 = vmatpush1.bf16.msra.mxu0 0
    %1796 = vmatprep.subr.bf16.mxu0 0
    %1797 = vmatpush1.bf16.msra.mxu0 0
    %1798 = vmatprep.subr.bf16.mxu0 0
    %1799 = vmatpush1.bf16.msra.mxu0 0
    %1800 = vmatprep.mubr.bf16.mxu0 0
    %1801 = vmatmul.mubr.bf16.gmra.mrb[0].mxu0 %v1400
    %v1802 = vpop.f32.mrb[0].mxu0
    %v1803 = vadd.f32 0.0, %v1802
    %v1804 = vpop.f32.mrb[0].mxu0
    %v1805 = vadd.f32 0.0, %v1804
    %v1806 = vpop.f32.mrb[0].mxu0
    %v1807 = vadd.f32 0.0, %v1806
    %v1808 = vpop.f32.mrb[0].mxu0
    %v1809 = vadd.f32 0.0, %v1808
    %1810 = vmatprep.mubr.bf16.mxu0 0
    %1811 = vmatmul.mubr.bf16.gmra.mrb[0].mxu0 %v1401
    %v1812 = vpop.f32.mrb[0].mxu0
    %v1813 = vadd.f32 0.0, %v1812
    %v1814 = vpop.f32.mrb[0].mxu0
    %v1815 = vadd.f32 0.0, %v1814
    %v1816 = vpop.f32.mrb[0].mxu0
    %v1817 = vadd.f32 0.0, %v1816
    %v1818 = vpop.f32.mrb[0].mxu0
    %v1819 = vadd.f32 0.0, %v1818
    %1820 = vmatprep.mubr.bf16.mxu0 0
    %1821 = vmatmul.mubr.bf16.gmra.mrb[0].mxu0 %v1402
    %v1822 = vpop.f32.mrb[0].mxu0
    %v1823 = vadd.f32 0.0, %v1822
    %v1824 = vpop.f32.mrb[0].mxu0
    %v1825 = vadd.f32 0.0, %v1824
    %v1826 = vpop.f32.mrb[0].mxu0
    %v1827 = vpop.f32.mrb[0].mxu0
    %1828 = vdwg.mxu0
    %v1835 = vrot.slane %v1742, 1
    %v1836 = vrot.slane %v1746, 1
    %v1837 = vsel %vm835, %v1835, %v1836
    %v1838 = vrot.slane %v1744, 1
    %v1839 = vrot.slane %v1748, 1
    %v1840 = vsel %vm835, %v1838, %v1839
    %v1841 = vrot.slane %v1752, 1
    %v1842 = vsel %vm835, %v1836, %v1841
    %v1843 = vrot.slane %v1754, 1
    %v1844 = vsel %vm835, %v1839, %v1843
    %v1851 = vadd.f32 %v1681, %v1837
    %v1852 = vadd.f32 %v1683, %v1840
    %v1853 = vadd.f32 %v1685, %v1842
    %v1854 = vadd.f32 %v1687, %v1844
    %v1855 = vadd.f32 %v1691, %v1841
    %v1856 = vadd.f32 %v1693, %v1843
    %v1863 = vrot.slane %v1803, 2
    %v1864 = vrot.slane %v1807, 2
    %v1865 = vsel %vm864, %v1863, %v1864
    %v1866 = vrot.slane %v1805, 2
    %v1867 = vrot.slane %v1809, 2
    %v1868 = vsel %vm864, %v1866, %v1867
    %v1869 = vrot.slane %v1813, 2
    %v1870 = vsel %vm864, %v1864, %v1869
    %v1871 = vrot.slane %v1815, 2
    %v1872 = vsel %vm864, %v1867, %v1871
    %v1879 = vadd.f32 %v1851, %v1865
    %v1880 = vadd.f32 %v1852, %v1868
    %v1881 = vadd.f32 %v1853, %v1870
    %v1882 = vadd.f32 %v1854, %v1872
    %v1883 = vadd.f32 %v1855, %v1869
    %v1884 = vadd.f32 %v1856, %v1871
    %v1889 = vrot.slane %v1756, 1
    %v1890 = vsel %vm835, %v1841, %v1889
    %v1891 = vrot.slane %v1758, 1
    %v1892 = vsel %vm835, %v1843, %v1891
    %v1893 = vrot.slane %v1762, 1
    %v1894 = vsel %vm835, %v1889, %v1893
    %v1895 = vrot.slane %v1764, 1
    %v1896 = vsel %vm835, %v1891, %v1895
    %v1903 = vadd.f32 %v1691, %v1890
    %v1904 = vadd.f32 %v1693, %v1892
    %v1905 = vadd.f32 %v1695, %v1894
    %v1906 = vadd.f32 %v1697, %v1896
    %v1907 = vadd.f32 %v1701, %v1893
    %v1908 = vadd.f32 %v1703, %v1895
    %v1913 = vrot.slane %v1817, 2
    %v1914 = vsel %vm864, %v1869, %v1913
    %v1915 = vrot.slane %v1819, 2
    %v1916 = vsel %vm864, %v1871, %v1915
    %v1917 = vrot.slane %v1823, 2
    %v1918 = vsel %vm864, %v1913, %v1917
    %v1919 = vrot.slane %v1825, 2
    %v1920 = vsel %vm864, %v1915, %v1919
    %v1927 = vadd.f32 %v1903, %v1914
    %v1928 = vadd.f32 %v1904, %v1916
    %v1929 = vadd.f32 %v1905, %v1918
    %v1930 = vadd.f32 %v1906, %v1920
    %v1931 = vadd.f32 %v1907, %v1917
    %v1932 = vadd.f32 %v1908, %v1919
    %v1939 = vrot.slane %v1879, 1
    %v1940 = vrot.slane %v1881, 1
    %v1941 = vsel %vm835, %v1939, %v1940
    %v1942 = vrot.slane %v1880, 1
    %v1943 = vrot.slane %v1882, 1
    %v1944 = vsel %vm835, %v1942, %v1943
    %v1945 = vrot.slane %v1883, 1
    %v1946 = vsel %vm835, %v1940, %v1945
    %v1947 = vrot.slane %v1884, 1
    %v1948 = vsel %vm835, %v1943, %v1947
    %v1959 = vrot.slane %v1927, 5
    %v1960 = vrot.slane %v1929, 5
    %v1961 = vsel %vm961, %v1959, %v1960
    %v1962 = vrot.slane %v1928, 5
    %v1963 = vrot.slane %v1930, 5
    %v1964 = vsel %vm961, %v1962, %v1963
    %v1965 = vrot.slane %v1931, 5
    %v1966 = vsel %vm961, %v1960, %v1965
    %v1967 = vrot.slane %v1932, 5
    %v1968 = vsel %vm961, %v1963, %v1967
    %v1973 = vld [vmem:[%s11] sm:$0x3]
    %v1975 = vlaneseq
    %v1976 = vshrl.u32 %v1975, 7
    %v1977 = vsub.s32 0, %v1976
    %v1978 = vrot.slane %v1973, %v1977
    %v1979 = vlaneseq
    %v1980 = vshrl.u32 %v1979, 7
    %v1981 = vsub.s32 1, %v1980
    %v1982 = vrot.slane %v1973, %v1981
    %v1985 = vmul.f32 %v1941, %v1978
    %v1986 = vmul.f32 %v1944, %v1982
    %v1987 = vmul.f32 %v1946, %v1978
    %v1988 = vmul.f32 %v1948, %v1982
    %v1989 = vmul.f32 %v1961, %v1978
    %v1990 = vmul.f32 %v1964, %v1982
    %v1991 = vmul.f32 %v1966, %v1978
    %v1992 = vmul.f32 %v1968, %v1982
    %v1993 = vld [vmem:[%s12] sm:$0x3]
    %v1995 = vlaneseq
    %v1996 = vshrl.u32 %v1995, 7
    %v1997 = vsub.s32 0, %v1996
    %v1998 = vrot.slane %v1993, %v1997
    %v1999 = vlaneseq
    %v2000 = vshrl.u32 %v1999, 7
    %v2001 = vsub.s32 1, %v2000
    %v2002 = vrot.slane %v1993, %v2001
    %v2005 = vadd.f32 %v1985, %v1998
    %v2006 = vadd.f32 %v1986, %v2002
    %v2007 = vadd.f32 %v1987, %v1998
    %v2008 = vadd.f32 %v1988, %v2002
    %v2009 = vadd.f32 %v1989, %v1998
    %v2010 = vadd.f32 %v1990, %v2002
    %v2011 = vadd.f32 %v1991, %v1998
    %v2012 = vadd.f32 %v1992, %v2002
    %v2013 = vxor.u32 %v2005, 2147483648
    %v2014 = vxor.u32 %v2006, 2147483648
    %v2015 = vxor.u32 %v2007, 2147483648
    %v2016 = vxor.u32 %v2008, 2147483648
    %v2017 = vxor.u32 %v2009, 2147483648
    %v2018 = vxor.u32 %v2010, 2147483648
    %v2019 = vxor.u32 %v2011, 2147483648
    %v2020 = vxor.u32 %v2012, 2147483648
    %v2021 = vmul.f32 %v2013, 1.442695
    %v2022 = vpow.pop %v2021
    %v2023 = vmul.f32 %v2014, 1.442695
    %v2024 = vpow.pop %v2023
    %v2025 = vmul.f32 %v2015, 1.442695
    %v2026 = vpow.pop %v2025
    %v2027 = vmul.f32 %v2016, 1.442695
    %v2028 = vpow.pop %v2027
    %v2029 = vmul.f32 %v2017, 1.442695
    %v2030 = vpow.pop %v2029
    %v2031 = vmul.f32 %v2018, 1.442695
    %v2032 = vpow.pop %v2031
    %v2033 = vmul.f32 %v2019, 1.442695
    %v2034 = vpow.pop %v2033
    %v2035 = vmul.f32 %v2020, 1.442695
    %v2036 = vpow.pop %v2035
    %v2037 = vadd.f32 %v2022, 1.0
    %v2038 = vadd.f32 %v2024, 1.0
    %v2039 = vadd.f32 %v2026, 1.0
    %v2040 = vadd.f32 %v2028, 1.0
    %v2041 = vadd.f32 %v2030, 1.0
    %v2042 = vadd.f32 %v2032, 1.0
    %v2043 = vadd.f32 %v2034, 1.0
    %v2044 = vadd.f32 %v2036, 1.0
    %v2045 = vrcp.pop %v2037
    %v2046 = vmul.f32 1.0, %v2045
    %v2047 = vrcp.pop %v2038
    %v2048 = vmul.f32 1.0, %v2047
    %v2049 = vrcp.pop %v2039
    %v2050 = vmul.f32 1.0, %v2049
    %v2051 = vrcp.pop %v2040
    %v2052 = vmul.f32 1.0, %v2051
    %v2053 = vrcp.pop %v2041
    %v2054 = vmul.f32 1.0, %v2053
    %v2055 = vrcp.pop %v2042
    %v2056 = vmul.f32 1.0, %v2055
    %v2057 = vrcp.pop %v2043
    %v2058 = vmul.f32 1.0, %v2057
    %v2059 = vrcp.pop %v2044
    %v2060 = vmul.f32 1.0, %v2059
    %v2061 = vmul.f32 %v2005, %v2046
    %v2062 = vmul.f32 %v2006, %v2048
    %v2063 = vmul.f32 %v2007, %v2050
    %v2064 = vmul.f32 %v2008, %v2052
    %v2065 = vmul.f32 %v2009, %v2054
    %v2066 = vmul.f32 %v2010, %v2056
    %v2067 = vmul.f32 %v2011, %v2058
    %v2068 = vmul.f32 %v2012, %v2060
    %v2069 = vadd.f32 %v2061, %v1064
    %v2070 = vadd.f32 %v2062, %v1065
    %v2071 = vadd.f32 %v2063, %v1066
    %v2072 = vadd.f32 %v2064, %v1067
    %v2073 = vadd.f32 %v2065, %v1068
    %v2074 = vadd.f32 %v2066, %v1069
    %v2075 = vadd.f32 %v2067, %v1070
    %v2076 = vadd.f32 %v2068, %v1071
    %2077 = vst [vmem:[#allocation12] sm:$0xff] %v2069
    %2078 = vst [vmem:[#allocation12 + $0x8] sm:$0xff] %v2070
    %2079 = vst [vmem:[#allocation12 + $0x10] sm:$0xff] %v2071
    %2080 = vst [vmem:[#allocation12 + $0x18] sm:$0xff] %v2072
    %2081 = vst [vmem:[#allocation12 + $0x20] sm:$0xff] %v2073
    %2082 = vst [vmem:[#allocation12 + $0x28] sm:$0xff] %v2074
    %2083 = vst [vmem:[#allocation12 + $0x30] sm:$0xff] %v2075
    %2084 = vst [vmem:[#allocation12 + $0x38] sm:$0xff] %v2076
    // Predicated region
    $region74: #{tpu_custom_call.1} parent=1 // pred_check
      _
    $region75: #{tpu_custom_call.1} parent=1 // pred_check_branch
      %2086 = sbr.rel (0) target = $region77
    $region76: #{tpu_custom_call.1} parent=1 // pred_region
      %s2088 = ssub.s32 1024, 1024
      %2089 = vsyncadd [#allocation5], %s2088
      %s2090 = sshll.u32 [#allocation12], 4
      %s2091 = int_to_ptr.vmem [resolvable:$true] %s2090
      %2096 = dma.vmem_to_hbm [thread:$0]  %s2091, 1024, %s13, [#allocation5], 256, 256, 16
    $region77: #{tpu_custom_call.1} parent=1 // pred_fallthru
      _
    // Predicated region
    $region78: #{tpu_custom_call.1} parent=1 // pred_check
      _
    $region79: #{tpu_custom_call.1} parent=1 // pred_check_branch
      %2098 = sbr.rel (0) target = $region81
    $region80: #{tpu_custom_call.1} parent=1 // pred_region
      %2099 = dma.done [#allocation5], 1024
    $region81: #{tpu_custom_call.1} parent=1 // pred_fallthru
      _
    %2100 = vsyncpa [#allocation4], 1
    %2101 = vsyncpa [#allocation7], 1
    %2102 = vsyncpa [#allocation10], 1
    %2103 = vsyncpa [#allocation5], 1

</llo_original>
